<compile_context>
chip_gen: v7x
topology: tpu7x:2x2x1
jax: 0.10.0
libtpu: 0.0.40
codegen_flags: <defaults>
</compile_context>

<pallas_src>
import numpy as np

import jax
import jax.numpy as jnp
from jax.experimental import pallas as pl
from jax.experimental.pallas import tpu as pltpu


# ----------------------------------------------------------------------------
# Adaptive-pooling matrices (exact PyTorch floor/ceil bin semantics).
# ----------------------------------------------------------------------------
def _adaptive_pool_matrix(out_size, in_size):
    m = np.zeros((out_size, in_size), np.float32)
    for i in range(out_size):
        s = (i * in_size) // out_size                        # floor
        e = ((i + 1) * in_size + out_size - 1) // out_size   # ceil
        m[i, s:e] = 1.0 / float(e - s)
    return m


# ----------------------------------------------------------------------------
# Fused: AdaptiveAvgPool3d -> Conv3d(1x1x1) -> Conv3d(1x1x1), one pallas_call.
# ----------------------------------------------------------------------------
def _convmlp_fused(x5, packed, c_in, c_hidden, c_out, pool_sizes):
    n, _, d, h, w = x5.shape
    p_d, p_h, p_w = pool_sizes
    hw = h * w
    php_w = p_h * p_w

    pd_np = _adaptive_pool_matrix(p_d, d)
    ph_np = _adaptive_pool_matrix(p_h, h)
    pw_np = _adaptive_pool_matrix(p_w, w)
    phw_t = jnp.asarray(np.kron(ph_np, pw_np).T)   # (H*W, Ph*Pw)
    pd_m = jnp.asarray(pd_np)                      # (Pd, D)

    x4 = x5.reshape(n, c_in, d, hw)                # free row-major reshape

    # Packed-parameter offsets (all static).
    off_w1 = 0
    off_b1 = off_w1 + c_hidden * c_in
    off_w2 = off_b1 + c_hidden
    off_b2 = off_w2 + c_out * c_hidden

    def kernel(prm, x_ref, phw_ref, pd_ref, o_ref):
        # --- adaptive pooling: two 2-D matmuls per channel (MXU) -------------
        pooled = []
        for c in range(c_in):
            t = jnp.dot(x_ref[0, c], phw_ref[...],
                        preferred_element_type=jnp.float32)          # (D, Ph*Pw)
            pooled.append(jnp.dot(pd_ref[...], t,
                                  preferred_element_type=jnp.float32))  # (Pd, Ph*Pw)

        # --- conv1 -> conv2 fused as VPU broadcast-FMAs (scalars from SMEM) --
        acc = [None] * c_out
        for j in range(c_hidden):
            hvec = pooled[0] * prm[off_w1 + j * c_in + 0]
            for c in range(1, c_in):
                hvec = hvec + pooled[c] * prm[off_w1 + j * c_in + c]
            hvec = hvec + prm[off_b1 + j]
            for p in range(c_out):
                contrib = hvec * prm[off_w2 + p * c_hidden + j]
                acc[p] = contrib if acc[p] is None else acc[p] + contrib
        for p in range(c_out):
            o_ref[0, p] = (acc[p] + prm[off_b2 + p]).astype(o_ref.dtype)

    out = pl.pallas_call(
        kernel,
        out_shape=jax.ShapeDtypeStruct((n, c_out, p_d, php_w), x5.dtype),
        grid_spec=pltpu.PrefetchScalarGridSpec(
            num_scalar_prefetch=0,
            grid=(n,),
            in_specs=[
                pl.BlockSpec(memory_space=pltpu.MemorySpace.SMEM),        # packed params
                pl.BlockSpec((1, c_in, d, hw), lambda b: (b, 0, 0, 0)),   # x (per batch)
                pl.BlockSpec((hw, php_w), lambda b: (0, 0)),              # (ph (x) pw)^T
                pl.BlockSpec((p_d, d), lambda b: (0, 0)),                 # pd
            ],
            out_specs=pl.BlockSpec((1, c_out, p_d, php_w),
                                   lambda b: (b, 0, 0, 0)),
        ),
        compiler_params=pltpu.CompilerParams(
            dimension_semantics=("parallel",)),
    )(packed, x4, phw_t, pd_m)

    return out.reshape(n, c_out, p_d, p_h, p_w)


# ----------------------------------------------------------------------------
# 'linear' path: single 1x1x1 Conv3d, no pooling.  Full-M block, no padding.
# ----------------------------------------------------------------------------
def _linear_conv(x5, packed, c_in, c_out):
    n, _, d, h, w = x5.shape
    hw = h * w
    x4 = x5.reshape(n, c_in, d, hw)
    off_b = c_out * c_in

    def kernel(prm, x_ref, o_ref):
        for p in range(c_out):
            acc = x_ref[0, 0] * prm[p * c_in + 0]
            for c in range(1, c_in):
                acc = acc + x_ref[0, c] * prm[p * c_in + c]
            o_ref[0, p] = (acc + prm[off_b + p]).astype(o_ref.dtype)

    out = pl.pallas_call(
        kernel,
        out_shape=jax.ShapeDtypeStruct((n, c_out, d, hw), x5.dtype),
        grid_spec=pltpu.PrefetchScalarGridSpec(
            num_scalar_prefetch=0,
            grid=(n,),
            in_specs=[
                pl.BlockSpec(memory_space=pltpu.MemorySpace.SMEM),       # packed params
                pl.BlockSpec((1, c_in, d, hw), lambda b: (b, 0, 0, 0)),  # x (per batch)
            ],
            out_specs=pl.BlockSpec((1, c_out, d, hw), lambda b: (b, 0, 0, 0)),
        ),
        compiler_params=pltpu.CompilerParams(
            dimension_semantics=("parallel",)),
    )(packed, x4)

    return out.reshape(n, c_out, d, h, w)


# ----------------------------------------------------------------------------
# Parameters + forward
# ----------------------------------------------------------------------------
def init_params(key, dim_in=4, proj_dim=4, proj='convmlp'):
    """PyTorch Conv3d(k=1) default init: U(-1/sqrt(fan_in), 1/sqrt(fan_in)).

    Weights/biases are also pre-packed into one small 1-D array ('packed')
    which the kernel reads from SMEM (single tiny DMA).
    """
    def conv_init(k, cout, cin):
        kw, kb = jax.random.split(k)
        bound = 1.0 / float(np.sqrt(cin))
        w = jax.random.uniform(kw, (cout, cin), jnp.float32, -bound, bound)
        b = jax.random.uniform(kb, (cout,), jnp.float32, -bound, bound)
        return w, b

    if proj == 'linear':
        w, b = conv_init(key, proj_dim, dim_in)
        return {'w': w, 'b': b, 'packed': jnp.concatenate([w.ravel(), b])}
    k1, k2 = jax.random.split(key)
    w1, b1 = conv_init(k1, dim_in * 2, dim_in)
    w2, b2 = conv_init(k2, proj_dim, dim_in * 2)
    packed = jnp.concatenate([w1.ravel(), b1, w2.ravel(), b2])
    return {'w1': w1, 'b1': b1, 'w2': w2, 'b2': b2, 'packed': packed}


def projection_head_3d_forward(params, x, proj='convmlp', output_pooling_size=16):
    if proj == 'linear':
        c_out, c_in = params['w'].shape
        return _linear_conv(x, params['packed'], c_in, c_out)
    if isinstance(output_pooling_size, int):
        pool_sizes = (output_pooling_size,) * 3
    else:
        pool_sizes = tuple(output_pooling_size)
    c_hidden, c_in = params['w1'].shape
    c_out = params['w2'].shape[0]
    return _convmlp_fused(x, params['packed'], c_in, c_hidden, c_out, pool_sizes)


# ----------------------------------------------------------------------------
# Pure-JAX reference for validation.
# ----------------------------------------------------------------------------
def _adaptive_avg_pool3d_ref(x, out_size):
    if isinstance(out_size, int):
        out_size = (out_size,) * 3
    _, _, d, h, w = x.shape
    pd = jnp.asarray(_adaptive_pool_matrix(out_size[0], d))
    ph = jnp.asarray(_adaptive_pool_matrix(out_size[1], h))
    pw = jnp.asarray(_adaptive_pool_matrix(out_size[2], w))
    y = jnp.einsum('od,ncdhw->ncohw', pd, x)
    y = jnp.einsum('ph,ncohw->ncopw', ph, y)
    y = jnp.einsum('qw,ncopw->ncopq', pw, y)
    return y


def _forward_ref(params, x, proj='convmlp', output_pooling_size=16):
    if proj == 'linear':
        return (jnp.einsum('oc,ncdhw->nodhw', params['w'], x)
                + params['b'].reshape(1, -1, 1, 1, 1))
    p = _adaptive_avg_pool3d_ref(x, output_pooling_size)
    hmid = (jnp.einsum('oc,ncdhw->nodhw', params['w1'], p)
            + params['b1'].reshape(1, -1, 1, 1, 1))
    return (jnp.einsum('po,nodhw->npdhw', params['w2'], hmid)
            + params['b2'].reshape(1, -1, 1, 1, 1))


if __name__ == "__main__":
    key = jax.random.PRNGKey(0)
    kp, kpl, kx = jax.random.split(key, 3)

    dim_in, proj_dim, pool = 4, 4, 16
    # Non-multiple-of-16 spatial sizes exercise real adaptive pooling.
    x = jax.random.normal(kx, (2, dim_in, 24, 20, 18), jnp.float32)

    # Default path: proj='convmlp' (AdaptiveAvgPool3d -> Conv3d -> Conv3d), fully fused.
    params = init_params(kp, dim_in=dim_in, proj_dim=proj_dim, proj='convmlp')
    fwd = jax.jit(lambda p, xx: projection_head_3d_forward(
        p, xx, proj='convmlp', output_pooling_size=pool))
    out = jax.block_until_ready(fwd(params, x))
    assert out.shape == (2, proj_dim, pool, pool, pool), out.shape
    ref = _forward_ref(params, x, 'convmlp', pool)
    assert jnp.allclose(out, ref, atol=1e-4, rtol=1e-4), \
        float(jnp.max(jnp.abs(out - ref)))

    # 'linear' path: single 1x1x1 Conv3d, no pooling, no padding.
    params_lin = init_params(kpl, dim_in=dim_in, proj_dim=proj_dim, proj='linear')
    fwd_lin = jax.jit(lambda p, xx: projection_head_3d_forward(p, xx, proj='linear'))
    out_lin = jax.block_until_ready(fwd_lin(params_lin, x))
    assert out_lin.shape == (2, proj_dim, 24, 20, 18), out_lin.shape
    ref_lin = _forward_ref(params_lin, x, 'linear')
    assert jnp.allclose(out_lin, ref_lin, atol=1e-4, rtol=1e-4), \
        float(jnp.max(jnp.abs(out_lin - ref_lin)))

    print("KERNEL_OK")
</pallas_src>

<mosaic_0001>
module attributes {stable_mosaic.version = 11 : i64} {
  func.func @kernel(%arg0: i32, %arg1: memref<76xf32, #tpu.memory_space<smem>>, %arg2: memref<1x4x24x360xf32, #tpu.memory_space<vmem>>, %arg3: memref<360x256xf32, #tpu.memory_space<vmem>>, %arg4: memref<16x24xf32, #tpu.memory_space<vmem>>, %arg5: memref<1x4x16x256xf32, #tpu.memory_space<vmem>>) attributes {dimension_semantics = [#tpu.dimension_semantics<parallel>], iteration_bounds = array<i64: 2>, scalar_prefetch = 0 : i64, scratch_operands = 0 : i64, tpu.core_type = #tpu.core_type<tc>, window_params = [{transform_indices = @transform_0, window_bounds = array<i64: 76>}, {transform_indices = @transform_1, window_bounds = array<i64: 1, 4, 24, 360>}, {pipeline_mode = #tpu.pipeline_mode<synchronous>, transform_indices = @transform_2, window_bounds = array<i64: 360, 256>}, {pipeline_mode = #tpu.pipeline_mode<synchronous>, transform_indices = @transform_3, window_bounds = array<i64: 16, 24>}, {transform_indices = @transform_4, window_bounds = array<i64: 1, 4, 16, 256>}]} {
    %c0 = arith.constant 0 : index
    %c0_0 = arith.constant 0 : index
    %c0_1 = arith.constant 0 : index
    %c0_2 = arith.constant 0 : index
    %0 = vector.load %arg2[%c0, %c0_0, %c0_1, %c0_2] : memref<1x4x24x360xf32, #tpu.memory_space<vmem>>, vector<1x1x24x360xf32>
    %1 = vector.shape_cast %0 : vector<1x1x24x360xf32> to vector<24x360xf32>
    %c0_3 = arith.constant 0 : index
    %c0_4 = arith.constant 0 : index
    %2 = vector.load %arg3[%c0_3, %c0_4] : memref<360x256xf32, #tpu.memory_space<vmem>>, vector<360x256xf32>
    %cst = arith.constant dense<0.000000e+00> : vector<24x256xf32>
    %3 = tpu.matmul %1, %2, %cst {dimension_numbers = #tpu.dot_dimension_numbers<[1], [0], [0], [1], [0, 0, 1, 1], [], []>} : vector<24x360xf32>, vector<360x256xf32>, vector<24x256xf32> -> vector<24x256xf32>
    %c0_5 = arith.constant 0 : index
    %c0_6 = arith.constant 0 : index
    %4 = vector.load %arg4[%c0_5, %c0_6] : memref<16x24xf32, #tpu.memory_space<vmem>>, vector<16x24xf32>
    %cst_7 = arith.constant dense<0.000000e+00> : vector<16x256xf32>
    %5 = tpu.matmul %4, %3, %cst_7 {dimension_numbers = #tpu.dot_dimension_numbers<[1], [0], [0], [1], [0, 0, 1, 1], [], []>} : vector<16x24xf32>, vector<24x256xf32>, vector<16x256xf32> -> vector<16x256xf32>
    %c0_8 = arith.constant 0 : index
    %c1 = arith.constant 1 : index
    %c0_9 = arith.constant 0 : index
    %c0_10 = arith.constant 0 : index
    %6 = vector.load %arg2[%c0_8, %c1, %c0_9, %c0_10] : memref<1x4x24x360xf32, #tpu.memory_space<vmem>>, vector<1x1x24x360xf32>
    %7 = vector.shape_cast %6 : vector<1x1x24x360xf32> to vector<24x360xf32>
    %c0_11 = arith.constant 0 : index
    %c0_12 = arith.constant 0 : index
    %8 = vector.load %arg3[%c0_11, %c0_12] : memref<360x256xf32, #tpu.memory_space<vmem>>, vector<360x256xf32>
    %cst_13 = arith.constant dense<0.000000e+00> : vector<24x256xf32>
    %9 = tpu.matmul %7, %8, %cst_13 {dimension_numbers = #tpu.dot_dimension_numbers<[1], [0], [0], [1], [0, 0, 1, 1], [], []>} : vector<24x360xf32>, vector<360x256xf32>, vector<24x256xf32> -> vector<24x256xf32>
    %c0_14 = arith.constant 0 : index
    %c0_15 = arith.constant 0 : index
    %10 = vector.load %arg4[%c0_14, %c0_15] : memref<16x24xf32, #tpu.memory_space<vmem>>, vector<16x24xf32>
    %cst_16 = arith.constant dense<0.000000e+00> : vector<16x256xf32>
    %11 = tpu.matmul %10, %9, %cst_16 {dimension_numbers = #tpu.dot_dimension_numbers<[1], [0], [0], [1], [0, 0, 1, 1], [], []>} : vector<16x24xf32>, vector<24x256xf32>, vector<16x256xf32> -> vector<16x256xf32>
    %c0_17 = arith.constant 0 : index
    %c2 = arith.constant 2 : index
    %c0_18 = arith.constant 0 : index
    %c0_19 = arith.constant 0 : index
    %12 = vector.load %arg2[%c0_17, %c2, %c0_18, %c0_19] : memref<1x4x24x360xf32, #tpu.memory_space<vmem>>, vector<1x1x24x360xf32>
    %13 = vector.shape_cast %12 : vector<1x1x24x360xf32> to vector<24x360xf32>
    %c0_20 = arith.constant 0 : index
    %c0_21 = arith.constant 0 : index
    %14 = vector.load %arg3[%c0_20, %c0_21] : memref<360x256xf32, #tpu.memory_space<vmem>>, vector<360x256xf32>
    %cst_22 = arith.constant dense<0.000000e+00> : vector<24x256xf32>
    %15 = tpu.matmul %13, %14, %cst_22 {dimension_numbers = #tpu.dot_dimension_numbers<[1], [0], [0], [1], [0, 0, 1, 1], [], []>} : vector<24x360xf32>, vector<360x256xf32>, vector<24x256xf32> -> vector<24x256xf32>
    %c0_23 = arith.constant 0 : index
    %c0_24 = arith.constant 0 : index
    %16 = vector.load %arg4[%c0_23, %c0_24] : memref<16x24xf32, #tpu.memory_space<vmem>>, vector<16x24xf32>
    %cst_25 = arith.constant dense<0.000000e+00> : vector<16x256xf32>
    %17 = tpu.matmul %16, %15, %cst_25 {dimension_numbers = #tpu.dot_dimension_numbers<[1], [0], [0], [1], [0, 0, 1, 1], [], []>} : vector<16x24xf32>, vector<24x256xf32>, vector<16x256xf32> -> vector<16x256xf32>
    %c0_26 = arith.constant 0 : index
    %c3 = arith.constant 3 : index
    %c0_27 = arith.constant 0 : index
    %c0_28 = arith.constant 0 : index
    %18 = vector.load %arg2[%c0_26, %c3, %c0_27, %c0_28] : memref<1x4x24x360xf32, #tpu.memory_space<vmem>>, vector<1x1x24x360xf32>
    %19 = vector.shape_cast %18 : vector<1x1x24x360xf32> to vector<24x360xf32>
    %c0_29 = arith.constant 0 : index
    %c0_30 = arith.constant 0 : index
    %20 = vector.load %arg3[%c0_29, %c0_30] : memref<360x256xf32, #tpu.memory_space<vmem>>, vector<360x256xf32>
    %cst_31 = arith.constant dense<0.000000e+00> : vector<24x256xf32>
    %21 = tpu.matmul %19, %20, %cst_31 {dimension_numbers = #tpu.dot_dimension_numbers<[1], [0], [0], [1], [0, 0, 1, 1], [], []>} : vector<24x360xf32>, vector<360x256xf32>, vector<24x256xf32> -> vector<24x256xf32>
    %c0_32 = arith.constant 0 : index
    %c0_33 = arith.constant 0 : index
    %22 = vector.load %arg4[%c0_32, %c0_33] : memref<16x24xf32, #tpu.memory_space<vmem>>, vector<16x24xf32>
    %cst_34 = arith.constant dense<0.000000e+00> : vector<16x256xf32>
    %23 = tpu.matmul %22, %21, %cst_34 {dimension_numbers = #tpu.dot_dimension_numbers<[1], [0], [0], [1], [0, 0, 1, 1], [], []>} : vector<16x24xf32>, vector<24x256xf32>, vector<16x256xf32> -> vector<16x256xf32>
    %c0_35 = arith.constant 0 : index
    %24 = memref.load %arg1[%c0_35] : memref<76xf32, #tpu.memory_space<smem>>
    %25 = vector.broadcast %24 : f32 to vector<16x256xf32>
    %26 = arith.mulf %5, %25 : vector<16x256xf32>
    %c1_36 = arith.constant 1 : index
    %27 = memref.load %arg1[%c1_36] : memref<76xf32, #tpu.memory_space<smem>>
    %28 = vector.broadcast %27 : f32 to vector<16x256xf32>
    %29 = arith.mulf %11, %28 : vector<16x256xf32>
    %30 = arith.addf %26, %29 : vector<16x256xf32>
    %c2_37 = arith.constant 2 : index
    %31 = memref.load %arg1[%c2_37] : memref<76xf32, #tpu.memory_space<smem>>
    %32 = vector.broadcast %31 : f32 to vector<16x256xf32>
    %33 = arith.mulf %17, %32 : vector<16x256xf32>
    %34 = arith.addf %30, %33 : vector<16x256xf32>
    %c3_38 = arith.constant 3 : index
    %35 = memref.load %arg1[%c3_38] : memref<76xf32, #tpu.memory_space<smem>>
    %36 = vector.broadcast %35 : f32 to vector<16x256xf32>
    %37 = arith.mulf %23, %36 : vector<16x256xf32>
    %38 = arith.addf %34, %37 : vector<16x256xf32>
    %c32 = arith.constant 32 : index
    %39 = memref.load %arg1[%c32] : memref<76xf32, #tpu.memory_space<smem>>
    %40 = vector.broadcast %39 : f32 to vector<16x256xf32>
    %41 = arith.addf %38, %40 : vector<16x256xf32>
    %c40 = arith.constant 40 : index
    %42 = memref.load %arg1[%c40] : memref<76xf32, #tpu.memory_space<smem>>
    %43 = vector.broadcast %42 : f32 to vector<16x256xf32>
    %44 = arith.mulf %41, %43 : vector<16x256xf32>
    %c48 = arith.constant 48 : index
    %45 = memref.load %arg1[%c48] : memref<76xf32, #tpu.memory_space<smem>>
    %46 = vector.broadcast %45 : f32 to vector<16x256xf32>
    %47 = arith.mulf %41, %46 : vector<16x256xf32>
    %c56 = arith.constant 56 : index
    %48 = memref.load %arg1[%c56] : memref<76xf32, #tpu.memory_space<smem>>
    %49 = vector.broadcast %48 : f32 to vector<16x256xf32>
    %50 = arith.mulf %41, %49 : vector<16x256xf32>
    %c64 = arith.constant 64 : index
    %51 = memref.load %arg1[%c64] : memref<76xf32, #tpu.memory_space<smem>>
    %52 = vector.broadcast %51 : f32 to vector<16x256xf32>
    %53 = arith.mulf %41, %52 : vector<16x256xf32>
    %c4 = arith.constant 4 : index
    %54 = memref.load %arg1[%c4] : memref<76xf32, #tpu.memory_space<smem>>
    %55 = vector.broadcast %54 : f32 to vector<16x256xf32>
    %56 = arith.mulf %5, %55 : vector<16x256xf32>
    %c5 = arith.constant 5 : index
    %57 = memref.load %arg1[%c5] : memref<76xf32, #tpu.memory_space<smem>>
    %58 = vector.broadcast %57 : f32 to vector<16x256xf32>
    %59 = arith.mulf %11, %58 : vector<16x256xf32>
    %60 = arith.addf %56, %59 : vector<16x256xf32>
    %c6 = arith.constant 6 : index
    %61 = memref.load %arg1[%c6] : memref<76xf32, #tpu.memory_space<smem>>
    %62 = vector.broadcast %61 : f32 to vector<16x256xf32>
    %63 = arith.mulf %17, %62 : vector<16x256xf32>
    %64 = arith.addf %60, %63 : vector<16x256xf32>
    %c7 = arith.constant 7 : index
    %65 = memref.load %arg1[%c7] : memref<76xf32, #tpu.memory_space<smem>>
    %66 = vector.broadcast %65 : f32 to vector<16x256xf32>
    %67 = arith.mulf %23, %66 : vector<16x256xf32>
    %68 = arith.addf %64, %67 : vector<16x256xf32>
    %c33 = arith.constant 33 : index
    %69 = memref.load %arg1[%c33] : memref<76xf32, #tpu.memory_space<smem>>
    %70 = vector.broadcast %69 : f32 to vector<16x256xf32>
    %71 = arith.addf %68, %70 : vector<16x256xf32>
    %c41 = arith.constant 41 : index
    %72 = memref.load %arg1[%c41] : memref<76xf32, #tpu.memory_space<smem>>
    %73 = vector.broadcast %72 : f32 to vector<16x256xf32>
    %74 = arith.mulf %71, %73 : vector<16x256xf32>
    %75 = arith.addf %44, %74 : vector<16x256xf32>
    %c49 = arith.constant 49 : index
    %76 = memref.load %arg1[%c49] : memref<76xf32, #tpu.memory_space<smem>>
    %77 = vector.broadcast %76 : f32 to vector<16x256xf32>
    %78 = arith.mulf %71, %77 : vector<16x256xf32>
    %79 = arith.addf %47, %78 : vector<16x256xf32>
    %c57 = arith.constant 57 : index
    %80 = memref.load %arg1[%c57] : memref<76xf32, #tpu.memory_space<smem>>
    %81 = vector.broadcast %80 : f32 to vector<16x256xf32>
    %82 = arith.mulf %71, %81 : vector<16x256xf32>
    %83 = arith.addf %50, %82 : vector<16x256xf32>
    %c65 = arith.constant 65 : index
    %84 = memref.load %arg1[%c65] : memref<76xf32, #tpu.memory_space<smem>>
    %85 = vector.broadcast %84 : f32 to vector<16x256xf32>
    %86 = arith.mulf %71, %85 : vector<16x256xf32>
    %87 = arith.addf %53, %86 : vector<16x256xf32>
    %c8 = arith.constant 8 : index
    %88 = memref.load %arg1[%c8] : memref<76xf32, #tpu.memory_space<smem>>
    %89 = vector.broadcast %88 : f32 to vector<16x256xf32>
    %90 = arith.mulf %5, %89 : vector<16x256xf32>
    %c9 = arith.constant 9 : index
    %91 = memref.load %arg1[%c9] : memref<76xf32, #tpu.memory_space<smem>>
    %92 = vector.broadcast %91 : f32 to vector<16x256xf32>
    %93 = arith.mulf %11, %92 : vector<16x256xf32>
    %94 = arith.addf %90, %93 : vector<16x256xf32>
    %c10 = arith.constant 10 : index
    %95 = memref.load %arg1[%c10] : memref<76xf32, #tpu.memory_space<smem>>
    %96 = vector.broadcast %95 : f32 to vector<16x256xf32>
    %97 = arith.mulf %17, %96 : vector<16x256xf32>
    %98 = arith.addf %94, %97 : vector<16x256xf32>
    %c11 = arith.constant 11 : index
    %99 = memref.load %arg1[%c11] : memref<76xf32, #tpu.memory_space<smem>>
    %100 = vector.broadcast %99 : f32 to vector<16x256xf32>
    %101 = arith.mulf %23, %100 : vector<16x256xf32>
    %102 = arith.addf %98, %101 : vector<16x256xf32>
    %c34 = arith.constant 34 : index
    %103 = memref.load %arg1[%c34] : memref<76xf32, #tpu.memory_space<smem>>
    %104 = vector.broadcast %103 : f32 to vector<16x256xf32>
    %105 = arith.addf %102, %104 : vector<16x256xf32>
    %c42 = arith.constant 42 : index
    %106 = memref.load %arg1[%c42] : memref<76xf32, #tpu.memory_space<smem>>
    %107 = vector.broadcast %106 : f32 to vector<16x256xf32>
    %108 = arith.mulf %105, %107 : vector<16x256xf32>
    %109 = arith.addf %75, %108 : vector<16x256xf32>
    %c50 = arith.constant 50 : index
    %110 = memref.load %arg1[%c50] : memref<76xf32, #tpu.memory_space<smem>>
    %111 = vector.broadcast %110 : f32 to vector<16x256xf32>
    %112 = arith.mulf %105, %111 : vector<16x256xf32>
    %113 = arith.addf %79, %112 : vector<16x256xf32>
    %c58 = arith.constant 58 : index
    %114 = memref.load %arg1[%c58] : memref<76xf32, #tpu.memory_space<smem>>
    %115 = vector.broadcast %114 : f32 to vector<16x256xf32>
    %116 = arith.mulf %105, %115 : vector<16x256xf32>
    %117 = arith.addf %83, %116 : vector<16x256xf32>
    %c66 = arith.constant 66 : index
    %118 = memref.load %arg1[%c66] : memref<76xf32, #tpu.memory_space<smem>>
    %119 = vector.broadcast %118 : f32 to vector<16x256xf32>
    %120 = arith.mulf %105, %119 : vector<16x256xf32>
    %121 = arith.addf %87, %120 : vector<16x256xf32>
    %c12 = arith.constant 12 : index
    %122 = memref.load %arg1[%c12] : memref<76xf32, #tpu.memory_space<smem>>
    %123 = vector.broadcast %122 : f32 to vector<16x256xf32>
    %124 = arith.mulf %5, %123 : vector<16x256xf32>
    %c13 = arith.constant 13 : index
    %125 = memref.load %arg1[%c13] : memref<76xf32, #tpu.memory_space<smem>>
    %126 = vector.broadcast %125 : f32 to vector<16x256xf32>
    %127 = arith.mulf %11, %126 : vector<16x256xf32>
    %128 = arith.addf %124, %127 : vector<16x256xf32>
    %c14 = arith.constant 14 : index
    %129 = memref.load %arg1[%c14] : memref<76xf32, #tpu.memory_space<smem>>
    %130 = vector.broadcast %129 : f32 to vector<16x256xf32>
    %131 = arith.mulf %17, %130 : vector<16x256xf32>
    %132 = arith.addf %128, %131 : vector<16x256xf32>
    %c15 = arith.constant 15 : index
    %133 = memref.load %arg1[%c15] : memref<76xf32, #tpu.memory_space<smem>>
    %134 = vector.broadcast %133 : f32 to vector<16x256xf32>
    %135 = arith.mulf %23, %134 : vector<16x256xf32>
    %136 = arith.addf %132, %135 : vector<16x256xf32>
    %c35 = arith.constant 35 : index
    %137 = memref.load %arg1[%c35] : memref<76xf32, #tpu.memory_space<smem>>
    %138 = vector.broadcast %137 : f32 to vector<16x256xf32>
    %139 = arith.addf %136, %138 : vector<16x256xf32>
    %c43 = arith.constant 43 : index
    %140 = memref.load %arg1[%c43] : memref<76xf32, #tpu.memory_space<smem>>
    %141 = vector.broadcast %140 : f32 to vector<16x256xf32>
    %142 = arith.mulf %139, %141 : vector<16x256xf32>
    %143 = arith.addf %109, %142 : vector<16x256xf32>
    %c51 = arith.constant 51 : index
    %144 = memref.load %arg1[%c51] : memref<76xf32, #tpu.memory_space<smem>>
    %145 = vector.broadcast %144 : f32 to vector<16x256xf32>
    %146 = arith.mulf %139, %145 : vector<16x256xf32>
    %147 = arith.addf %113, %146 : vector<16x256xf32>
    %c59 = arith.constant 59 : index
    %148 = memref.load %arg1[%c59] : memref<76xf32, #tpu.memory_space<smem>>
    %149 = vector.broadcast %148 : f32 to vector<16x256xf32>
    %150 = arith.mulf %139, %149 : vector<16x256xf32>
    %151 = arith.addf %117, %150 : vector<16x256xf32>
    %c67 = arith.constant 67 : index
    %152 = memref.load %arg1[%c67] : memref<76xf32, #tpu.memory_space<smem>>
    %153 = vector.broadcast %152 : f32 to vector<16x256xf32>
    %154 = arith.mulf %139, %153 : vector<16x256xf32>
    %155 = arith.addf %121, %154 : vector<16x256xf32>
    %c16 = arith.constant 16 : index
    %156 = memref.load %arg1[%c16] : memref<76xf32, #tpu.memory_space<smem>>
    %157 = vector.broadcast %156 : f32 to vector<16x256xf32>
    %158 = arith.mulf %5, %157 : vector<16x256xf32>
    %c17 = arith.constant 17 : index
    %159 = memref.load %arg1[%c17] : memref<76xf32, #tpu.memory_space<smem>>
    %160 = vector.broadcast %159 : f32 to vector<16x256xf32>
    %161 = arith.mulf %11, %160 : vector<16x256xf32>
    %162 = arith.addf %158, %161 : vector<16x256xf32>
    %c18 = arith.constant 18 : index
    %163 = memref.load %arg1[%c18] : memref<76xf32, #tpu.memory_space<smem>>
    %164 = vector.broadcast %163 : f32 to vector<16x256xf32>
    %165 = arith.mulf %17, %164 : vector<16x256xf32>
    %166 = arith.addf %162, %165 : vector<16x256xf32>
    %c19 = arith.constant 19 : index
    %167 = memref.load %arg1[%c19] : memref<76xf32, #tpu.memory_space<smem>>
    %168 = vector.broadcast %167 : f32 to vector<16x256xf32>
    %169 = arith.mulf %23, %168 : vector<16x256xf32>
    %170 = arith.addf %166, %169 : vector<16x256xf32>
    %c36 = arith.constant 36 : index
    %171 = memref.load %arg1[%c36] : memref<76xf32, #tpu.memory_space<smem>>
    %172 = vector.broadcast %171 : f32 to vector<16x256xf32>
    %173 = arith.addf %170, %172 : vector<16x256xf32>
    %c44 = arith.constant 44 : index
    %174 = memref.load %arg1[%c44] : memref<76xf32, #tpu.memory_space<smem>>
    %175 = vector.broadcast %174 : f32 to vector<16x256xf32>
    %176 = arith.mulf %173, %175 : vector<16x256xf32>
    %177 = arith.addf %143, %176 : vector<16x256xf32>
    %c52 = arith.constant 52 : index
    %178 = memref.load %arg1[%c52] : memref<76xf32, #tpu.memory_space<smem>>
    %179 = vector.broadcast %178 : f32 to vector<16x256xf32>
    %180 = arith.mulf %173, %179 : vector<16x256xf32>
    %181 = arith.addf %147, %180 : vector<16x256xf32>
    %c60 = arith.constant 60 : index
    %182 = memref.load %arg1[%c60] : memref<76xf32, #tpu.memory_space<smem>>
    %183 = vector.broadcast %182 : f32 to vector<16x256xf32>
    %184 = arith.mulf %173, %183 : vector<16x256xf32>
    %185 = arith.addf %151, %184 : vector<16x256xf32>
    %c68 = arith.constant 68 : index
    %186 = memref.load %arg1[%c68] : memref<76xf32, #tpu.memory_space<smem>>
    %187 = vector.broadcast %186 : f32 to vector<16x256xf32>
    %188 = arith.mulf %173, %187 : vector<16x256xf32>
    %189 = arith.addf %155, %188 : vector<16x256xf32>
    %c20 = arith.constant 20 : index
    %190 = memref.load %arg1[%c20] : memref<76xf32, #tpu.memory_space<smem>>
    %191 = vector.broadcast %190 : f32 to vector<16x256xf32>
    %192 = arith.mulf %5, %191 : vector<16x256xf32>
    %c21 = arith.constant 21 : index
    %193 = memref.load %arg1[%c21] : memref<76xf32, #tpu.memory_space<smem>>
    %194 = vector.broadcast %193 : f32 to vector<16x256xf32>
    %195 = arith.mulf %11, %194 : vector<16x256xf32>
    %196 = arith.addf %192, %195 : vector<16x256xf32>
    %c22 = arith.constant 22 : index
    %197 = memref.load %arg1[%c22] : memref<76xf32, #tpu.memory_space<smem>>
    %198 = vector.broadcast %197 : f32 to vector<16x256xf32>
    %199 = arith.mulf %17, %198 : vector<16x256xf32>
    %200 = arith.addf %196, %199 : vector<16x256xf32>
    %c23 = arith.constant 23 : index
    %201 = memref.load %arg1[%c23] : memref<76xf32, #tpu.memory_space<smem>>
    %202 = vector.broadcast %201 : f32 to vector<16x256xf32>
    %203 = arith.mulf %23, %202 : vector<16x256xf32>
    %204 = arith.addf %200, %203 : vector<16x256xf32>
    %c37 = arith.constant 37 : index
    %205 = memref.load %arg1[%c37] : memref<76xf32, #tpu.memory_space<smem>>
    %206 = vector.broadcast %205 : f32 to vector<16x256xf32>
    %207 = arith.addf %204, %206 : vector<16x256xf32>
    %c45 = arith.constant 45 : index
    %208 = memref.load %arg1[%c45] : memref<76xf32, #tpu.memory_space<smem>>
    %209 = vector.broadcast %208 : f32 to vector<16x256xf32>
    %210 = arith.mulf %207, %209 : vector<16x256xf32>
    %211 = arith.addf %177, %210 : vector<16x256xf32>
    %c53 = arith.constant 53 : index
    %212 = memref.load %arg1[%c53] : memref<76xf32, #tpu.memory_space<smem>>
    %213 = vector.broadcast %212 : f32 to vector<16x256xf32>
    %214 = arith.mulf %207, %213 : vector<16x256xf32>
    %215 = arith.addf %181, %214 : vector<16x256xf32>
    %c61 = arith.constant 61 : index
    %216 = memref.load %arg1[%c61] : memref<76xf32, #tpu.memory_space<smem>>
    %217 = vector.broadcast %216 : f32 to vector<16x256xf32>
    %218 = arith.mulf %207, %217 : vector<16x256xf32>
    %219 = arith.addf %185, %218 : vector<16x256xf32>
    %c69 = arith.constant 69 : index
    %220 = memref.load %arg1[%c69] : memref<76xf32, #tpu.memory_space<smem>>
    %221 = vector.broadcast %220 : f32 to vector<16x256xf32>
    %222 = arith.mulf %207, %221 : vector<16x256xf32>
    %223 = arith.addf %189, %222 : vector<16x256xf32>
    %c24 = arith.constant 24 : index
    %224 = memref.load %arg1[%c24] : memref<76xf32, #tpu.memory_space<smem>>
    %225 = vector.broadcast %224 : f32 to vector<16x256xf32>
    %226 = arith.mulf %5, %225 : vector<16x256xf32>
    %c25 = arith.constant 25 : index
    %227 = memref.load %arg1[%c25] : memref<76xf32, #tpu.memory_space<smem>>
    %228 = vector.broadcast %227 : f32 to vector<16x256xf32>
    %229 = arith.mulf %11, %228 : vector<16x256xf32>
    %230 = arith.addf %226, %229 : vector<16x256xf32>
    %c26 = arith.constant 26 : index
    %231 = memref.load %arg1[%c26] : memref<76xf32, #tpu.memory_space<smem>>
    %232 = vector.broadcast %231 : f32 to vector<16x256xf32>
    %233 = arith.mulf %17, %232 : vector<16x256xf32>
    %234 = arith.addf %230, %233 : vector<16x256xf32>
    %c27 = arith.constant 27 : index
    %235 = memref.load %arg1[%c27] : memref<76xf32, #tpu.memory_space<smem>>
    %236 = vector.broadcast %235 : f32 to vector<16x256xf32>
    %237 = arith.mulf %23, %236 : vector<16x256xf32>
    %238 = arith.addf %234, %237 : vector<16x256xf32>
    %c38 = arith.constant 38 : index
    %239 = memref.load %arg1[%c38] : memref<76xf32, #tpu.memory_space<smem>>
    %240 = vector.broadcast %239 : f32 to vector<16x256xf32>
    %241 = arith.addf %238, %240 : vector<16x256xf32>
    %c46 = arith.constant 46 : index
    %242 = memref.load %arg1[%c46] : memref<76xf32, #tpu.memory_space<smem>>
    %243 = vector.broadcast %242 : f32 to vector<16x256xf32>
    %244 = arith.mulf %241, %243 : vector<16x256xf32>
    %245 = arith.addf %211, %244 : vector<16x256xf32>
    %c54 = arith.constant 54 : index
    %246 = memref.load %arg1[%c54] : memref<76xf32, #tpu.memory_space<smem>>
    %247 = vector.broadcast %246 : f32 to vector<16x256xf32>
    %248 = arith.mulf %241, %247 : vector<16x256xf32>
    %249 = arith.addf %215, %248 : vector<16x256xf32>
    %c62 = arith.constant 62 : index
    %250 = memref.load %arg1[%c62] : memref<76xf32, #tpu.memory_space<smem>>
    %251 = vector.broadcast %250 : f32 to vector<16x256xf32>
    %252 = arith.mulf %241, %251 : vector<16x256xf32>
    %253 = arith.addf %219, %252 : vector<16x256xf32>
    %c70 = arith.constant 70 : index
    %254 = memref.load %arg1[%c70] : memref<76xf32, #tpu.memory_space<smem>>
    %255 = vector.broadcast %254 : f32 to vector<16x256xf32>
    %256 = arith.mulf %241, %255 : vector<16x256xf32>
    %257 = arith.addf %223, %256 : vector<16x256xf32>
    %c28 = arith.constant 28 : index
    %258 = memref.load %arg1[%c28] : memref<76xf32, #tpu.memory_space<smem>>
    %259 = vector.broadcast %258 : f32 to vector<16x256xf32>
    %260 = arith.mulf %5, %259 : vector<16x256xf32>
    %c29 = arith.constant 29 : index
    %261 = memref.load %arg1[%c29] : memref<76xf32, #tpu.memory_space<smem>>
    %262 = vector.broadcast %261 : f32 to vector<16x256xf32>
    %263 = arith.mulf %11, %262 : vector<16x256xf32>
    %264 = arith.addf %260, %263 : vector<16x256xf32>
    %c30 = arith.constant 30 : index
    %265 = memref.load %arg1[%c30] : memref<76xf32, #tpu.memory_space<smem>>
    %266 = vector.broadcast %265 : f32 to vector<16x256xf32>
    %267 = arith.mulf %17, %266 : vector<16x256xf32>
    %268 = arith.addf %264, %267 : vector<16x256xf32>
    %c31 = arith.constant 31 : index
    %269 = memref.load %arg1[%c31] : memref<76xf32, #tpu.memory_space<smem>>
    %270 = vector.broadcast %269 : f32 to vector<16x256xf32>
    %271 = arith.mulf %23, %270 : vector<16x256xf32>
    %272 = arith.addf %268, %271 : vector<16x256xf32>
    %c39 = arith.constant 39 : index
    %273 = memref.load %arg1[%c39] : memref<76xf32, #tpu.memory_space<smem>>
    %274 = vector.broadcast %273 : f32 to vector<16x256xf32>
    %275 = arith.addf %272, %274 : vector<16x256xf32>
    %c47 = arith.constant 47 : index
    %276 = memref.load %arg1[%c47] : memref<76xf32, #tpu.memory_space<smem>>
    %277 = vector.broadcast %276 : f32 to vector<16x256xf32>
    %278 = arith.mulf %275, %277 : vector<16x256xf32>
    %279 = arith.addf %245, %278 : vector<16x256xf32>
    %c55 = arith.constant 55 : index
    %280 = memref.load %arg1[%c55] : memref<76xf32, #tpu.memory_space<smem>>
    %281 = vector.broadcast %280 : f32 to vector<16x256xf32>
    %282 = arith.mulf %275, %281 : vector<16x256xf32>
    %283 = arith.addf %249, %282 : vector<16x256xf32>
    %c63 = arith.constant 63 : index
    %284 = memref.load %arg1[%c63] : memref<76xf32, #tpu.memory_space<smem>>
    %285 = vector.broadcast %284 : f32 to vector<16x256xf32>
    %286 = arith.mulf %275, %285 : vector<16x256xf32>
    %287 = arith.addf %253, %286 : vector<16x256xf32>
    %c71 = arith.constant 71 : index
    %288 = memref.load %arg1[%c71] : memref<76xf32, #tpu.memory_space<smem>>
    %289 = vector.broadcast %288 : f32 to vector<16x256xf32>
    %290 = arith.mulf %275, %289 : vector<16x256xf32>
    %291 = arith.addf %257, %290 : vector<16x256xf32>
    %c72 = arith.constant 72 : index
    %292 = memref.load %arg1[%c72] : memref<76xf32, #tpu.memory_space<smem>>
    %293 = vector.broadcast %292 : f32 to vector<16x256xf32>
    %294 = arith.addf %279, %293 : vector<16x256xf32>
    %c0_39 = arith.constant 0 : index
    %c0_40 = arith.constant 0 : index
    %c0_41 = arith.constant 0 : index
    %c0_42 = arith.constant 0 : index
    %295 = vector.load %arg5[%c0_39, %c0_40, %c0_41, %c0_42] : memref<1x4x16x256xf32, #tpu.memory_space<vmem>>, vector<1x1x16x256xf32>
    %296 = vector.shape_cast %295 : vector<1x1x16x256xf32> to vector<16x256xf32>
    %297 = vector.shape_cast %294 : vector<16x256xf32> to vector<1x1x16x256xf32>
    tpu.vector_store %arg5[%c0_39, %c0_40, %c0_41, %c0_42], %297 {strides = array<i32>} : memref<1x4x16x256xf32, #tpu.memory_space<vmem>>, vector<1x1x16x256xf32>,
    %c73 = arith.constant 73 : index
    %298 = memref.load %arg1[%c73] : memref<76xf32, #tpu.memory_space<smem>>
    %299 = vector.broadcast %298 : f32 to vector<16x256xf32>
    %300 = arith.addf %283, %299 : vector<16x256xf32>
    %c0_43 = arith.constant 0 : index
    %c1_44 = arith.constant 1 : index
    %c0_45 = arith.constant 0 : index
    %c0_46 = arith.constant 0 : index
    %301 = vector.load %arg5[%c0_43, %c1_44, %c0_45, %c0_46] : memref<1x4x16x256xf32, #tpu.memory_space<vmem>>, vector<1x1x16x256xf32>
    %302 = vector.shape_cast %301 : vector<1x1x16x256xf32> to vector<16x256xf32>
    %303 = vector.shape_cast %300 : vector<16x256xf32> to vector<1x1x16x256xf32>
    tpu.vector_store %arg5[%c0_43, %c1_44, %c0_45, %c0_46], %303 {strides = array<i32>} : memref<1x4x16x256xf32, #tpu.memory_space<vmem>>, vector<1x1x16x256xf32>,
    %c74 = arith.constant 74 : index
    %304 = memref.load %arg1[%c74] : memref<76xf32, #tpu.memory_space<smem>>
    %305 = vector.broadcast %304 : f32 to vector<16x256xf32>
    %306 = arith.addf %287, %305 : vector<16x256xf32>
    %c0_47 = arith.constant 0 : index
    %c2_48 = arith.constant 2 : index
    %c0_49 = arith.constant 0 : index
    %c0_50 = arith.constant 0 : index
    %307 = vector.load %arg5[%c0_47, %c2_48, %c0_49, %c0_50] : memref<1x4x16x256xf32, #tpu.memory_space<vmem>>, vector<1x1x16x256xf32>
    %308 = vector.shape_cast %307 : vector<1x1x16x256xf32> to vector<16x256xf32>
    %309 = vector.shape_cast %306 : vector<16x256xf32> to vector<1x1x16x256xf32>
    tpu.vector_store %arg5[%c0_47, %c2_48, %c0_49, %c0_50], %309 {strides = array<i32>} : memref<1x4x16x256xf32, #tpu.memory_space<vmem>>, vector<1x1x16x256xf32>,
    %c75 = arith.constant 75 : index
    %310 = memref.load %arg1[%c75] : memref<76xf32, #tpu.memory_space<smem>>
    %311 = vector.broadcast %310 : f32 to vector<16x256xf32>
    %312 = arith.addf %291, %311 : vector<16x256xf32>
    %c0_51 = arith.constant 0 : index
    %c3_52 = arith.constant 3 : index
    %c0_53 = arith.constant 0 : index
    %c0_54 = arith.constant 0 : index
    %313 = vector.load %arg5[%c0_51, %c3_52, %c0_53, %c0_54] : memref<1x4x16x256xf32, #tpu.memory_space<vmem>>, vector<1x1x16x256xf32>
    %314 = vector.shape_cast %313 : vector<1x1x16x256xf32> to vector<16x256xf32>
    %315 = vector.shape_cast %312 : vector<16x256xf32> to vector<1x1x16x256xf32>
    tpu.vector_store %arg5[%c0_51, %c3_52, %c0_53, %c0_54], %315 {strides = array<i32>} : memref<1x4x16x256xf32, #tpu.memory_space<vmem>>, vector<1x1x16x256xf32>,
    return
  }
  func.func @transform_0(%arg0: i32) -> i32 {
    %c0_i32 = arith.constant 0 : i32
    %c0_i32_0 = arith.constant 0 : i32
    return %c0_i32 : i32
  }
  func.func @transform_1(%arg0: i32) -> (i32, i32, i32, i32) {
    %c0_i32 = arith.constant 0 : i32
    %c0_i32_0 = arith.constant 0 : i32
    %c0_i32_1 = arith.constant 0 : i32
    %c0_i32_2 = arith.constant 0 : i32
    return %arg0, %c0_i32, %c0_i32_0, %c0_i32_1 : i32, i32, i32, i32
  }
  func.func @transform_2(%arg0: i32) -> (i32, i32) {
    %c0_i32 = arith.constant 0 : i32
    %c0_i32_0 = arith.constant 0 : i32
    %c0_i32_1 = arith.constant 0 : i32
    return %c0_i32, %c0_i32_0 : i32, i32
  }
  func.func @transform_3(%arg0: i32) -> (i32, i32) {
    %c0_i32 = arith.constant 0 : i32
    %c0_i32_0 = arith.constant 0 : i32
    %c0_i32_1 = arith.constant 0 : i32
    return %c0_i32, %c0_i32_0 : i32, i32
  }
  func.func @transform_4(%arg0: i32) -> (i32, i32, i32, i32) {
    %c0_i32 = arith.constant 0 : i32
    %c0_i32_0 = arith.constant 0 : i32
    %c0_i32_1 = arith.constant 0 : i32
    %c0_i32_2 = arith.constant 0 : i32
    return %arg0, %c0_i32, %c0_i32_0, %c0_i32_1 : i32, i32, i32, i32
  }
}

</mosaic_0001>

<llo_original>
// kernel: _lambda_.1
$region0: #{_lambda_.1}
  #allocation0 [shape = 'u32[]', space=smem, size = 0x4, offset = 0x4, fixed_abs, tag = 'smem constant byte address 0x4 - core index']
  #allocation1 [shape = 'u32[144,128]{1,0:T(1,128)}', space=vmem, size = 0x12000, scoped, tag = 'internal scratch']
  %s0 = inlined_call_operand.vmem [shape: f32[76], index: 0, kind: input, shape index: {}]
  %s1 = inlined_call_operand.vmem [shape: f32[2,4,24,360], index: 1, kind: input, shape index: {}]
  %s2 = inlined_call_operand.vmem [shape: f32[360,256], index: 2, kind: input, shape index: {}]
  %s3 = inlined_call_operand.vmem [shape: f32[16,24], index: 3, kind: input, shape index: {}]
  %s4 = inlined_call_operand.vmem [shape: f32[2,4,16,256], index: 4, kind: output, shape index: {}]
  %s5 = sld [smem:[#allocation0]]
  $region53: #{_lambda_.1} parent=0
    _
  %s7 = ssub.s32 1, %s5
  %s8 = scalar_select 0, %s7, %s5
  $region1: #{_lambda_.1} parent=0
    #allocation2 [shape = 'u8[512]{0}', space=smem, size = 0x200, scoped, tag = 'input window, operand 0, single buffered']
    #allocation3 [shape = 's32[2]{0}', space=sflag, size = 0x8, scoped, tag = 'scoped memory for _lambda_.1']
    %9 = vsyncpa [#allocation3], 0
    loop: start=0, step=1, limit=4
    $region2: #{_lambda_.1} parent=1 // loop_pre_header
      _
    $region3: #{_lambda_.1} parent=1 // loop_header
      %s11 = sphi 0, %s15
      %p12 = scmp.ge.s32.totalorder %s11, 4
      %s19 = sphi 0, %s19
      %s21 = sphi 0, %s19
      %s22 = sphi 0, %s21
      %s36 = sphi 0, %s22
      %s42 = sphi 0, %s44
      %s45 = sphi 0, %s42
      %s46 = sphi 0, %s45
      %s62 = sphi 0, %s46
      %s66 = sphi 0, %s66
      %s68 = sphi 0, %s66
      %s69 = sphi 0, %s68
      %s83 = sphi 0, %s69
      %s87 = sphi 0, %s87
      %s89 = sphi 0, %s87
      %s90 = sphi 0, %s89
      %s104 = sphi 0, %s90
      %s110 = sphi 0, %s112
      %s113 = sphi 0, %s110
      %s114 = sphi 0, %s113
      %s130 = sphi 0, %s114
    $region4: #{_lambda_.1} parent=1 // loop_header_branch
      %14 = sbr.rel (%p12) target = $region8
    $region5: #{_lambda_.1} parent=1 // loop_body
      %s16 = ssub.s32 %s11, 1
      %s17 = ssub.s32 %s11, 2
      %s18 = sadd.s32 %s11, 1
      %s20 = sadd.s32 %s19, 1
      %p23 = scmp.eq.s32.totalorder %s11, 1
      %p24 = scmp.ne.s32.totalorder %s19, %s21
      %p25 = scmp.eq.s32.totalorder %s11, 0
      %p26 = por %p24, %p25
      %p27 = scmp.ne.s32.totalorder %s19, %s21
      %p28 = scmp.eq.s32.totalorder %s16, 1
      %p29 = por %p27, %p28
      %p30 = scmp.ne.s32.totalorder %s21, %s22
      %p31 = scmp.eq.s32.totalorder %s16, 0
      %p32 = por %p30, %p31
      %p33 = scmp.ne.s32.totalorder %s21, %s22
      %p34 = scmp.eq.s32.totalorder %s17, 1
      %p35 = por %p33, %p34
      %p37 = scmp.ne.s32.totalorder %s22, %s36
      %p38 = scmp.eq.s32.totalorder %s17, 0
      %p39 = por %p37, %p38
      %s40 = ssub.s32 %s11, %s18
      %p41 = scmp.eq.s32.totalorder %s40, 0
      %s43 = sadd.s32 %s42, 1
      %s44 = scalar_select %p41, %s42, %s43
      %p47 = pneg %p41
      %p48 = scmp.eq.s32.totalorder %s11, 1
      %p49 = por %p47, %p48
      %p50 = scmp.ne.s32.totalorder %s42, %s45
      %p51 = scmp.eq.s32.totalorder %s11, 0
      %p52 = por %p50, %p51
      %p53 = scmp.ne.s32.totalorder %s42, %s45
      %p54 = scmp.eq.s32.totalorder %s16, 1
      %p55 = por %p53, %p54
      %p56 = scmp.ne.s32.totalorder %s45, %s46
      %p57 = scmp.eq.s32.totalorder %s16, 0
      %p58 = por %p56, %p57
      %p59 = scmp.ne.s32.totalorder %s45, %s46
      %p60 = scmp.eq.s32.totalorder %s17, 1
      %p61 = por %p59, %p60
      %p63 = scmp.ne.s32.totalorder %s46, %s62
      %p64 = scmp.eq.s32.totalorder %s17, 0
      %p65 = por %p63, %p64
      %s67 = sadd.s32 %s66, 1
      %p70 = scmp.eq.s32.totalorder %s11, 1
      %p71 = scmp.ne.s32.totalorder %s66, %s68
      %p72 = scmp.eq.s32.totalorder %s11, 0
      %p73 = por %p71, %p72
      %p74 = scmp.ne.s32.totalorder %s66, %s68
      %p75 = scmp.eq.s32.totalorder %s16, 1
      %p76 = por %p74, %p75
      %p77 = scmp.ne.s32.totalorder %s68, %s69
      %p78 = scmp.eq.s32.totalorder %s16, 0
      %p79 = por %p77, %p78
      %p80 = scmp.ne.s32.totalorder %s68, %s69
      %p81 = scmp.eq.s32.totalorder %s17, 1
      %p82 = por %p80, %p81
      %p84 = scmp.ne.s32.totalorder %s69, %s83
      %p85 = scmp.eq.s32.totalorder %s17, 0
      %p86 = por %p84, %p85
      %s88 = sadd.s32 %s87, 1
      %p91 = scmp.eq.s32.totalorder %s11, 1
      %p92 = scmp.ne.s32.totalorder %s87, %s89
      %p93 = scmp.eq.s32.totalorder %s11, 0
      %p94 = por %p92, %p93
      %p95 = scmp.ne.s32.totalorder %s87, %s89
      %p96 = scmp.eq.s32.totalorder %s16, 1
      %p97 = por %p95, %p96
      %p98 = scmp.ne.s32.totalorder %s89, %s90
      %p99 = scmp.eq.s32.totalorder %s16, 0
      %p100 = por %p98, %p99
      %p101 = scmp.ne.s32.totalorder %s89, %s90
      %p102 = scmp.eq.s32.totalorder %s17, 1
      %p103 = por %p101, %p102
      %p105 = scmp.ne.s32.totalorder %s90, %s104
      %p106 = scmp.eq.s32.totalorder %s17, 0
      %p107 = por %p105, %p106
      %s108 = ssub.s32 %s11, %s18
      %p109 = scmp.eq.s32.totalorder %s108, 0
      %s111 = sadd.s32 %s110, 1
      %s112 = scalar_select %p109, %s110, %s111
      %p115 = pneg %p109
      %p116 = scmp.eq.s32.totalorder %s11, 1
      %p117 = por %p115, %p116
      %p118 = scmp.ne.s32.totalorder %s110, %s113
      %p119 = scmp.eq.s32.totalorder %s11, 0
      %p120 = por %p118, %p119
      %p121 = scmp.ne.s32.totalorder %s110, %s113
      %p122 = scmp.eq.s32.totalorder %s16, 1
      %p123 = por %p121, %p122
      %p124 = scmp.ne.s32.totalorder %s113, %s114
      %p125 = scmp.eq.s32.totalorder %s16, 0
      %p126 = por %p124, %p125
      %p127 = scmp.ne.s32.totalorder %s113, %s114
      %p128 = scmp.eq.s32.totalorder %s17, 1
      %p129 = por %p127, %p128
      %p131 = scmp.ne.s32.totalorder %s114, %s130
      %p132 = scmp.eq.s32.totalorder %s17, 0
      %p133 = por %p131, %p132
      %p134 = scmp.le.s32.totalorder 1, %s11
      %p135 = scmp.lt.s32.totalorder %s11, 3
      %p136 = pnand %p134, %p135
      %p137 = pneg %p136
      // Predicated region
      $region9: #{_lambda_.1} parent=5 // pred_check
        _
      $region10: #{_lambda_.1} parent=5 // pred_check_branch
        %139 = sbr.rel (%p136) target = $region12
      $region11: #{_lambda_.1} parent=5 // pred_region
        %s140 = ssub.s32 %s11, 1
        // Predicated region
        $region13: #{_lambda_.1} parent=11 // pred_check
          %p141 = pneg %p32
        $region14: #{_lambda_.1} parent=11 // pred_check_branch
          %143 = sbr.rel (%p141) target = $region16
        $region15: #{_lambda_.1} parent=11 // pred_region
          %s145 = ssub.s32 16, 16
          %146 = vsyncadd [#allocation3], %s145
          %s148 = sshll.u32 %s0, 4
          %s149 = int_to_ptr.vmem [resolvable:$true] %s148
          %151 = dma.vmem_to_smem %s149, 16, [#allocation2], [#allocation3]
        $region16: #{_lambda_.1} parent=11 // pred_fallthru
          _
        // Predicated region
        $region17: #{_lambda_.1} parent=11 // pred_check
          %p152 = pneg %p79
        $region18: #{_lambda_.1} parent=11 // pred_check_branch
          %154 = sbr.rel (%p152) target = $region20
        $region19: #{_lambda_.1} parent=11 // pred_region
          _
        $region20: #{_lambda_.1} parent=11 // pred_fallthru
          _
        // Predicated region
        $region21: #{_lambda_.1} parent=11 // pred_check
          %p155 = pneg %p100
        $region22: #{_lambda_.1} parent=11 // pred_check_branch
          %157 = sbr.rel (%p155) target = $region24
        $region23: #{_lambda_.1} parent=11 // pred_region
          _
        $region24: #{_lambda_.1} parent=11 // pred_fallthru
          _
      $region12: #{_lambda_.1} parent=5 // pred_fallthru
        _
      %p158 = scmp.lt.s32.totalorder %s11, 2
      // Predicated region
      $region25: #{_lambda_.1} parent=5 // pred_check
        %p159 = pneg %p158
      $region26: #{_lambda_.1} parent=5 // pred_check_branch
        %161 = sbr.rel (%p159) target = $region28
      $region27: #{_lambda_.1} parent=5 // pred_region
        // Predicated region
        $region29: #{_lambda_.1} parent=27 // pred_check
          %p162 = pneg %p52
        $region30: #{_lambda_.1} parent=27 // pred_check_branch
          %164 = sbr.rel (%p162) target = $region32
        $region31: #{_lambda_.1} parent=27 // pred_region
          %p165 = scmp.lt.s32.totalorder %s11, 1
          %s166 = scalar_select %p165, %s11, 1
          %s167 = smul.addr %s166, 36
          %s168 = smul.addr %s167, 8
          %s169 = scalar_lea.vmem %s1, %s168
        $region32: #{_lambda_.1} parent=27 // pred_fallthru
          _
      $region28: #{_lambda_.1} parent=5 // pred_fallthru
        _
      %p170 = scmp.le.s32.totalorder 1, %s11
      %p171 = scmp.lt.s32.totalorder %s11, 3
      %p172 = pnand %p170, %p171
      %p173 = pneg %p172
      // Predicated region
      $region33: #{_lambda_.1} parent=5 // pred_check
        _
      $region34: #{_lambda_.1} parent=5 // pred_check_branch
        %175 = sbr.rel (%p172) target = $region36
      $region35: #{_lambda_.1} parent=5 // pred_region
        %s176 = ssub.s32 %s11, 1
        // Predicated region
        $region37: #{_lambda_.1} parent=35 // pred_check
          %p177 = pneg %p32
        $region38: #{_lambda_.1} parent=35 // pred_check_branch
          %179 = sbr.rel (%p177) target = $region40
        $region39: #{_lambda_.1} parent=35 // pred_region
          %180 = dma.done [#allocation3], 16
        $region40: #{_lambda_.1} parent=35 // pred_fallthru
          _
        %181 = sfence
        %p182 = pneg %p32
        %p183 = pneg %p29
        %p184 = scmp.lt.s32.totalorder %s16, 1
        %s185 = scalar_select %p184, %s16, 1
        %s186 = smul.addr %s185, 36
        %s187 = smul.addr %s186, 8
        %s188 = scalar_lea.vmem %s1, %s187
        %p189 = pneg %p58
        %p190 = pneg %p55
        %p191 = pneg %p79
        %p192 = pneg %p76
        %p193 = pneg %p100
        %p194 = pneg %p97
        %p195 = pneg %p126
        %p196 = pneg %p123
        %p197 = scmp.lt.s32.totalorder %s16, 1
        %s198 = scalar_select %p197, %s16, 1
        %s199 = smul.addr %s198, 16
        %s200 = smul.addr %s199, 8
        %s201 = scalar_lea.vmem %s4, %s200
        %p202 = scmp.lt.s32.totalorder %s16, 1
        %s203 = scalar_select %p202, %s16, 1
        %s204 = smul.addr %s203, 36
        %s205 = smul.addr %s204, 8
        %s206 = scalar_lea.vmem %s1, %s205
        %p207 = scmp.lt.s32.totalorder %s16, 1
        %s208 = scalar_select %p207, %s16, 1
        %s209 = smul.addr %s208, 16
        %s210 = smul.addr %s209, 8
        %s211 = scalar_lea.vmem %s4, %s210
        %v212 = vld [vmem:[%s206] sm:$0xff]
        %v213 = vld [vmem:[%s206 + $0x8] sm:$0xff]
        %v214 = vld [vmem:[%s206 + $0x10] sm:$0xff]
        %v215 = vld [vmem:[%s206 + $0x18] sm:$0xff]
        %v216 = vld [vmem:[%s206 + $0x20] sm:$0xff]
        %v217 = vld [vmem:[%s206 + $0x28] sm:$0xff]
        %v218 = vld [vmem:[%s206 + $0x30] sm:$0xff]
        %v219 = vld [vmem:[%s206 + $0x38] sm:$0xff]
        %v220 = vld [vmem:[%s206 + $0x40] sm:$0xff]
        %v221 = vld [vmem:[%s2] sm:$0xff]
        %v222 = vld [vmem:[%s2 + $0x8] sm:$0xff]
        %v223 = vld [vmem:[%s2 + $0x10] sm:$0xff]
        %v224 = vld [vmem:[%s2 + $0x18] sm:$0xff]
        %v225 = vld [vmem:[%s2 + $0x20] sm:$0xff]
        %v226 = vld [vmem:[%s2 + $0x28] sm:$0xff]
        %v227 = vld [vmem:[%s2 + $0x30] sm:$0xff]
        %v228 = vld [vmem:[%s2 + $0x38] sm:$0xff]
        %v229 = vld [vmem:[%s2 + $0x40] sm:$0xff]
        %v230 = vld [vmem:[%s2 + $0x48] sm:$0xff]
        %v231 = vld [vmem:[%s2 + $0x50] sm:$0xff]
        %v232 = vld [vmem:[%s2 + $0x58] sm:$0xff]
        %v233 = vld [vmem:[%s2 + $0x60] sm:$0xff]
        %v234 = vld [vmem:[%s2 + $0x68] sm:$0xff]
        %v235 = vld [vmem:[%s2 + $0x70] sm:$0xff]
        %v236 = vld [vmem:[%s2 + $0x78] sm:$0xff]
        %v237 = vld [vmem:[%s2 + $0x80] sm:$0xff]
        %v238 = vld [vmem:[%s2 + $0x88] sm:$0xff]
        %v239 = vld [vmem:[%s2 + $0x90] sm:$0xff]
        %v240 = vld [vmem:[%s2 + $0x98] sm:$0xff]
        %v241 = vld [vmem:[%s2 + $0xa0] sm:$0xff]
        %v242 = vld [vmem:[%s2 + $0xa8] sm:$0xff]
        %v243 = vld [vmem:[%s2 + $0xb0] sm:$0xff]
        %v244 = vld [vmem:[%s2 + $0xb8] sm:$0xff]
        %v245 = vld [vmem:[%s2 + $0xc0] sm:$0xff]
        %v246 = vld [vmem:[%s2 + $0xc8] sm:$0xff]
        %v247 = vld [vmem:[%s2 + $0xd0] sm:$0xff]
        %v248 = vld [vmem:[%s2 + $0xd8] sm:$0xff]
        %v249 = vld [vmem:[%s2 + $0xe0] sm:$0xff]
        %v250 = vld [vmem:[%s2 + $0xe8] sm:$0xff]
        %v251 = vld [vmem:[%s2 + $0xf0] sm:$0xff]
        %v252 = vld [vmem:[%s2 + $0xf8] sm:$0xff]
        %v253 = vld [vmem:[%s2 + $0x100] sm:$0xff]
        %v254 = vld [vmem:[%s2 + $0x108] sm:$0xff]
        %v255 = vld [vmem:[%s2 + $0x110] sm:$0xff]
        %v256 = vld [vmem:[%s2 + $0x118] sm:$0xff]
        %v257 = vld [vmem:[%s2 + $0x120] sm:$0xff]
        %v258 = vld [vmem:[%s2 + $0x128] sm:$0xff]
        %v259 = vld [vmem:[%s2 + $0x130] sm:$0xff]
        %v260 = vld [vmem:[%s2 + $0x138] sm:$0xff]
        %v261 = vld [vmem:[%s2 + $0x140] sm:$0xff]
        %v262 = vld [vmem:[%s2 + $0x148] sm:$0xff]
        %v263 = vld [vmem:[%s2 + $0x150] sm:$0xff]
        %v264 = vld [vmem:[%s2 + $0x158] sm:$0xff]
        %v265 = vld [vmem:[%s2 + $0x160] sm:$0xff]
        %v266 = vld [vmem:[%s2 + $0x168] sm:$0xff]
        %v267 = vld [vmem:[%s2 + $0x170] sm:$0xff]
        %v268 = vld [vmem:[%s2 + $0x178] sm:$0xff]
        %v269 = vld [vmem:[%s2 + $0x180] sm:$0xff]
        %v270 = vld [vmem:[%s2 + $0x188] sm:$0xff]
        %v271 = vld [vmem:[%s2 + $0x190] sm:$0xff]
        %v272 = vld [vmem:[%s2 + $0x198] sm:$0xff]
        %v273 = vld [vmem:[%s2 + $0x1a0] sm:$0xff]
        %v274 = vld [vmem:[%s2 + $0x1a8] sm:$0xff]
        %v275 = vld [vmem:[%s2 + $0x1b0] sm:$0xff]
        %v276 = vld [vmem:[%s2 + $0x1b8] sm:$0xff]
        %v277 = vld [vmem:[%s2 + $0x1c0] sm:$0xff]
        %v278 = vld [vmem:[%s2 + $0x1c8] sm:$0xff]
        %v279 = vld [vmem:[%s2 + $0x1d0] sm:$0xff]
        %v280 = vld [vmem:[%s2 + $0x1d8] sm:$0xff]
        %v281 = vld [vmem:[%s2 + $0x1e0] sm:$0xff]
        %v282 = vld [vmem:[%s2 + $0x1e8] sm:$0xff]
        %v283 = vld [vmem:[%s2 + $0x1f0] sm:$0xff]
        %v284 = vld [vmem:[%s2 + $0x1f8] sm:$0xff]
        %v285 = vld [vmem:[%s2 + $0x200] sm:$0xff]
        %v286 = vld [vmem:[%s2 + $0x208] sm:$0xff]
        %v287 = vld [vmem:[%s2 + $0x210] sm:$0xff]
        %v288 = vld [vmem:[%s2 + $0x218] sm:$0xff]
        %v289 = vld [vmem:[%s2 + $0x220] sm:$0xff]
        %v290 = vld [vmem:[%s2 + $0x228] sm:$0xff]
        %v291 = vld [vmem:[%s2 + $0x230] sm:$0xff]
        %v292 = vld [vmem:[%s2 + $0x238] sm:$0xff]
        %v293 = vld [vmem:[%s2 + $0x240] sm:$0xff]
        %v294 = vld [vmem:[%s2 + $0x248] sm:$0xff]
        %v295 = vld [vmem:[%s2 + $0x250] sm:$0xff]
        %v296 = vld [vmem:[%s2 + $0x258] sm:$0xff]
        %v297 = vld [vmem:[%s2 + $0x260] sm:$0xff]
        %v298 = vld [vmem:[%s2 + $0x268] sm:$0xff]
        %v299 = vld [vmem:[%s2 + $0x270] sm:$0xff]
        %v300 = vld [vmem:[%s2 + $0x278] sm:$0xff]
        %v301 = vld [vmem:[%s2 + $0x280] sm:$0xff]
        %v302 = vld [vmem:[%s2 + $0x288] sm:$0xff]
        %v303 = vld [vmem:[%s2 + $0x290] sm:$0xff]
        %v304 = vld [vmem:[%s2 + $0x298] sm:$0xff]
        %v305 = vld [vmem:[%s2 + $0x2a0] sm:$0xff]
        %v306 = vld [vmem:[%s2 + $0x2a8] sm:$0xff]
        %v307 = vld [vmem:[%s2 + $0x2b0] sm:$0xff]
        %v308 = vld [vmem:[%s2 + $0x2b8] sm:$0xff]
        %v309 = vld [vmem:[%s2 + $0x2c0] sm:$0xff]
        %v310 = vld [vmem:[%s2 + $0x2c8] sm:$0xff]
        %vm311 = vcmask 850944
        %v313 = vsel %vm311, %v214, 0
        %v316 = vsel %vm311, %v217, 0
        %v319 = vsel %vm311, %v220, 0
        %321 = vmatprep.subr.mxu0 %v222
        %322 = vmatpush1.msra.mxu0 %v221
        %323 = vmatprep.subr.mxu0 %v224
        %324 = vmatpush1.msra.mxu0 %v223
        %325 = vmatprep.subr.mxu0 %v226
        %326 = vmatpush1.msra.mxu0 %v225
        %327 = vmatprep.subr.mxu0 %v228
        %328 = vmatpush1.msra.mxu0 %v227
        %329 = vmatprep.subr.mxu0 %v230
        %330 = vmatpush1.msra.mxu0 %v229
        %331 = vmatprep.subr.mxu0 %v232
        %332 = vmatpush1.msra.mxu0 %v231
        %333 = vmatprep.subr.mxu0 %v234
        %334 = vmatpush1.msra.mxu0 %v233
        %335 = vmatprep.subr.mxu0 %v236
        %336 = vmatpush1.msra.mxu0 %v235
        %337 = vmatprep.subr.mxu0 %v238
        %338 = vmatpush1.msra.mxu0 %v237
        %339 = vmatprep.subr.mxu0 %v240
        %340 = vmatpush1.msra.mxu0 %v239
        %341 = vmatprep.subr.mxu0 %v242
        %342 = vmatpush1.msra.mxu0 %v241
        %343 = vmatprep.subr.mxu0 %v244
        %344 = vmatpush1.msra.mxu0 %v243
        %345 = vmatprep.subr.mxu0 %v246
        %346 = vmatpush1.msra.mxu0 %v245
        %347 = vmatprep.subr.mxu0 %v248
        %348 = vmatpush1.msra.mxu0 %v247
        %349 = vmatprep.subr.mxu0 %v250
        %350 = vmatpush1.msra.mxu0 %v249
        %351 = vmatprep.subr.mxu0 %v252
        %352 = vmatpush1.msra.mxu0 %v251
        %353 = vmatprep.subr.mxu0 %v254
        %354 = vmatpush1.msra.mxu0 %v253
        %355 = vmatprep.subr.mxu0 %v256
        %356 = vmatpush1.msra.mxu0 %v255
        %357 = vmatprep.subr.mxu0 %v258
        %358 = vmatpush1.msra.mxu0 %v257
        %359 = vmatprep.subr.mxu0 %v260
        %360 = vmatpush1.msra.mxu0 %v259
        %361 = vmatprep.subr.mxu0 %v262
        %362 = vmatpush1.msra.mxu0 %v261
        %363 = vmatprep.subr.mxu0 %v264
        %364 = vmatpush1.msra.mxu0 %v263
        %365 = vmatprep.subr.mxu0 %v266
        %366 = vmatpush1.msra.mxu0 %v265
        %367 = vmatprep.subr.mxu0 %v268
        %368 = vmatpush1.msra.mxu0 %v267
        %369 = vmatprep.subr.mxu0 %v270
        %370 = vmatpush1.msra.mxu0 %v269
        %371 = vmatprep.subr.mxu0 %v272
        %372 = vmatpush1.msra.mxu0 %v271
        %373 = vmatprep.subr.mxu0 %v274
        %374 = vmatpush1.msra.mxu0 %v273
        %375 = vmatprep.subr.mxu0 %v276
        %376 = vmatpush1.msra.mxu0 %v275
        %377 = vmatprep.subr.mxu0 %v278
        %378 = vmatpush1.msra.mxu0 %v277
        %379 = vmatprep.subr.mxu0 %v280
        %380 = vmatpush1.msra.mxu0 %v279
        %381 = vmatprep.subr.mxu0 %v282
        %382 = vmatpush1.msra.mxu0 %v281
        %383 = vmatprep.subr.mxu0 %v284
        %384 = vmatpush1.msra.mxu0 %v283
        %385 = vmatprep.mubr.f32.mxu0 %v213
        %386 = vmatmul.mubr.f32.gmra.mrb[0].mxu0 %v212
        %v387 = vpop.f32.mrb[0].mxu0
        %v388 = vadd.f32 0.0, %v387
        %v389 = vpop.f32.mrb[0].mxu0
        %v390 = vadd.f32 0.0, %v389
        %391 = vmatprep.mubr.f32.mxu0 %v216
        %392 = vmatmul.mubr.f32.gmra.mrb[0].mxu0 %v215
        %v393 = vpop.f32.mrb[0].mxu0
        %v394 = vadd.f32 0.0, %v393
        %v395 = vpop.f32.mrb[0].mxu0
        %v396 = vadd.f32 0.0, %v395
        %397 = vmatprep.mubr.f32.mxu0 %v219
        %398 = vmatmul.mubr.f32.gmra.mrb[0].mxu0 %v218
        %v399 = vpop.f32.mrb[0].mxu0
        %v400 = vadd.f32 0.0, %v399
        %v401 = vpop.f32.mrb[0].mxu0
        %v402 = vadd.f32 0.0, %v401
        %403 = vdwg.mxu0
        %404 = vmatprep.subr.mxu0 %v286
        %405 = vmatpush1.msra.mxu0 %v285
        %406 = vmatprep.subr.mxu0 %v288
        %407 = vmatpush1.msra.mxu0 %v287
        %408 = vmatprep.subr.mxu0 %v290
        %409 = vmatpush1.msra.mxu0 %v289
        %410 = vmatprep.subr.mxu0 %v292
        %411 = vmatpush1.msra.mxu0 %v291
        %412 = vmatprep.subr.mxu0 %v294
        %413 = vmatpush1.msra.mxu0 %v293
        %414 = vmatprep.subr.mxu0 %v296
        %415 = vmatpush1.msra.mxu0 %v295
        %416 = vmatprep.subr.mxu0 %v298
        %417 = vmatpush1.msra.mxu0 %v297
        %418 = vmatprep.subr.mxu0 %v300
        %419 = vmatpush1.msra.mxu0 %v299
        %420 = vmatprep.subr.mxu0 %v302
        %421 = vmatpush1.msra.mxu0 %v301
        %422 = vmatprep.subr.mxu0 %v304
        %423 = vmatpush1.msra.mxu0 %v303
        %424 = vmatprep.subr.mxu0 %v306
        %425 = vmatpush1.msra.mxu0 %v305
        %426 = vmatprep.subr.mxu0 %v308
        %427 = vmatpush1.msra.mxu0 %v307
        %428 = vmatprep.subr.mxu0 %v310
        %429 = vmatpush1.msra.mxu0 %v309
        %430 = vmatprep.subr.mxu0 0.0
        %431 = vmatpush1.msra.mxu0 0.0
        %432 = vmatprep.subr.mxu0 0.0
        %433 = vmatpush1.msra.mxu0 0.0
        %434 = vmatprep.subr.mxu0 0.0
        %435 = vmatpush1.msra.mxu0 0.0
        %436 = vmatprep.subr.mxu0 0.0
        %437 = vmatpush1.msra.mxu0 0.0
        %438 = vmatprep.subr.mxu0 0.0
        %439 = vmatpush1.msra.mxu0 0.0
        %440 = vmatprep.subr.mxu0 0.0
        %441 = vmatpush1.msra.mxu0 0.0
        %442 = vmatprep.subr.mxu0 0.0
        %443 = vmatpush1.msra.mxu0 0.0
        %444 = vmatprep.subr.mxu0 0.0
        %445 = vmatpush1.msra.mxu0 0.0
        %446 = vmatprep.subr.mxu0 0.0
        %447 = vmatpush1.msra.mxu0 0.0
        %448 = vmatprep.subr.mxu0 0.0
        %449 = vmatpush1.msra.mxu0 0.0
        %450 = vmatprep.subr.mxu0 0.0
        %451 = vmatpush1.msra.mxu0 0.0
        %452 = vmatprep.subr.mxu0 0.0
        %453 = vmatpush1.msra.mxu0 0.0
        %454 = vmatprep.subr.mxu0 0.0
        %455 = vmatpush1.msra.mxu0 0.0
        %456 = vmatprep.subr.mxu0 0.0
        %457 = vmatpush1.msra.mxu0 0.0
        %458 = vmatprep.subr.mxu0 0.0
        %459 = vmatpush1.msra.mxu0 0.0
        %460 = vmatprep.subr.mxu0 0.0
        %461 = vmatpush1.msra.mxu0 0.0
        %462 = vmatprep.subr.mxu0 0.0
        %463 = vmatpush1.msra.mxu0 0.0
        %464 = vmatprep.subr.mxu0 0.0
        %465 = vmatpush1.msra.mxu0 0.0
        %466 = vmatprep.subr.mxu0 0.0
        %467 = vmatpush1.msra.mxu0 0.0
        %468 = vmatprep.mubr.f32.mxu0 0.0
        %469 = vmatmul.mubr.f32.gmra.mrb[0].mxu0 %v313
        %v470 = vpop.f32.mrb[0].mxu0
        %v471 = vadd.f32 %v388, %v470
        %v472 = vpop.f32.mrb[0].mxu0
        %v473 = vadd.f32 %v390, %v472
        %474 = vmatprep.mubr.f32.mxu0 0.0
        %475 = vmatmul.mubr.f32.gmra.mrb[0].mxu0 %v316
        %v476 = vpop.f32.mrb[0].mxu0
        %v477 = vadd.f32 %v394, %v476
        %v478 = vpop.f32.mrb[0].mxu0
        %v479 = vadd.f32 %v396, %v478
        %480 = vmatprep.mubr.f32.mxu0 0.0
        %481 = vmatmul.mubr.f32.gmra.mrb[0].mxu0 %v319
        %v482 = vpop.f32.mrb[0].mxu0
        %v483 = vadd.f32 %v400, %v482
        %v484 = vpop.f32.mrb[0].mxu0
        %v485 = vadd.f32 %v402, %v484
        %486 = vdwg.mxu0
        %v487 = vld [vmem:[%s3] sm:$0xff]
        %v488 = vld [vmem:[%s3 + $0x8] sm:$0xff]
        %vm489 = vcmask 195584
        %v491 = vsel %vm489, %v487, 0
        %v494 = vsel %vm489, %v488, 0
        %496 = vmatprep.subr.mxu0 %v473
        %497 = vmatpush1.msra.mxu0 %v471
        %498 = vmatprep.subr.mxu0 %v479
        %499 = vmatpush1.msra.mxu0 %v477
        %500 = vmatprep.subr.mxu0 %v485
        %501 = vmatpush1.msra.mxu0 %v483
        %502 = vmatprep.subr.mxu0 0.0
        %503 = vmatpush1.msra.mxu0 0.0
        %504 = vmatprep.subr.mxu0 0.0
        %505 = vmatpush1.msra.mxu0 0.0
        %506 = vmatprep.subr.mxu0 0.0
        %507 = vmatpush1.msra.mxu0 0.0
        %508 = vmatprep.subr.mxu0 0.0
        %509 = vmatpush1.msra.mxu0 0.0
        %510 = vmatprep.subr.mxu0 0.0
        %511 = vmatpush1.msra.mxu0 0.0
        %512 = vmatprep.subr.mxu0 0.0
        %513 = vmatpush1.msra.mxu0 0.0
        %514 = vmatprep.subr.mxu0 0.0
        %515 = vmatpush1.msra.mxu0 0.0
        %516 = vmatprep.subr.mxu0 0.0
        %517 = vmatpush1.msra.mxu0 0.0
        %518 = vmatprep.subr.mxu0 0.0
        %519 = vmatpush1.msra.mxu0 0.0
        %520 = vmatprep.subr.mxu0 0.0
        %521 = vmatpush1.msra.mxu0 0.0
        %522 = vmatprep.subr.mxu0 0.0
        %523 = vmatpush1.msra.mxu0 0.0
        %524 = vmatprep.subr.mxu0 0.0
        %525 = vmatpush1.msra.mxu0 0.0
        %526 = vmatprep.subr.mxu0 0.0
        %527 = vmatpush1.msra.mxu0 0.0
        %528 = vmatprep.subr.mxu0 0.0
        %529 = vmatpush1.msra.mxu0 0.0
        %530 = vmatprep.subr.mxu0 0.0
        %531 = vmatpush1.msra.mxu0 0.0
        %532 = vmatprep.subr.mxu0 0.0
        %533 = vmatpush1.msra.mxu0 0.0
        %534 = vmatprep.subr.mxu0 0.0
        %535 = vmatpush1.msra.mxu0 0.0
        %536 = vmatprep.subr.mxu0 0.0
        %537 = vmatpush1.msra.mxu0 0.0
        %538 = vmatprep.subr.mxu0 0.0
        %539 = vmatpush1.msra.mxu0 0.0
        %540 = vmatprep.subr.mxu0 0.0
        %541 = vmatpush1.msra.mxu0 0.0
        %542 = vmatprep.subr.mxu0 0.0
        %543 = vmatpush1.msra.mxu0 0.0
        %544 = vmatprep.subr.mxu0 0.0
        %545 = vmatpush1.msra.mxu0 0.0
        %546 = vmatprep.subr.mxu0 0.0
        %547 = vmatpush1.msra.mxu0 0.0
        %548 = vmatprep.subr.mxu0 0.0
        %549 = vmatpush1.msra.mxu0 0.0
        %550 = vmatprep.subr.mxu0 0.0
        %551 = vmatpush1.msra.mxu0 0.0
        %552 = vmatprep.subr.mxu0 0.0
        %553 = vmatpush1.msra.mxu0 0.0
        %554 = vmatprep.subr.mxu0 0.0
        %555 = vmatpush1.msra.mxu0 0.0
        %556 = vmatprep.subr.mxu0 0.0
        %557 = vmatpush1.msra.mxu0 0.0
        %558 = vmatprep.subr.mxu0 0.0
        %559 = vmatpush1.msra.mxu0 0.0
        %560 = vmatprep.mubr.f32.mxu0 0.0
        %561 = vmatmul.mubr.f32.gmra.mrb[0].mxu0 %v491
        %v562 = vpop.f32.mrb[0].mxu0
        %v563 = vadd.f32 0.0, %v562
        %v564 = vpop.f32.mrb[0].mxu0
        %v565 = vadd.f32 0.0, %v564
        %566 = vmatprep.mubr.f32.mxu0 0.0
        %567 = vmatmul.mubr.f32.gmra.mrb[0].mxu0 %v494
        %v568 = vpop.f32.mrb[0].mxu0
        %v569 = vadd.f32 0.0, %v568
        %v570 = vpop.f32.mrb[0].mxu0
        %v571 = vadd.f32 0.0, %v570
        %572 = vdwg.mxu0
        %s573 = scalar_lea.vmem %s206, 72
        %v574 = vld [vmem:[%s573] sm:$0xff]
        %v575 = vld [vmem:[%s573 + $0x8] sm:$0xff]
        %v576 = vld [vmem:[%s573 + $0x10] sm:$0xff]
        %v577 = vld [vmem:[%s573 + $0x18] sm:$0xff]
        %v578 = vld [vmem:[%s573 + $0x20] sm:$0xff]
        %v579 = vld [vmem:[%s573 + $0x28] sm:$0xff]
        %v580 = vld [vmem:[%s573 + $0x30] sm:$0xff]
        %v581 = vld [vmem:[%s573 + $0x38] sm:$0xff]
        %v582 = vld [vmem:[%s573 + $0x40] sm:$0xff]
        %v584 = vsel %vm311, %v576, 0
        %v587 = vsel %vm311, %v579, 0
        %v590 = vsel %vm311, %v582, 0
        %592 = vmatprep.subr.mxu0 %v222
        %593 = vmatpush1.msra.mxu0 %v221
        %594 = vmatprep.subr.mxu0 %v224
        %595 = vmatpush1.msra.mxu0 %v223
        %596 = vmatprep.subr.mxu0 %v226
        %597 = vmatpush1.msra.mxu0 %v225
        %598 = vmatprep.subr.mxu0 %v228
        %599 = vmatpush1.msra.mxu0 %v227
        %600 = vmatprep.subr.mxu0 %v230
        %601 = vmatpush1.msra.mxu0 %v229
        %602 = vmatprep.subr.mxu0 %v232
        %603 = vmatpush1.msra.mxu0 %v231
        %604 = vmatprep.subr.mxu0 %v234
        %605 = vmatpush1.msra.mxu0 %v233
        %606 = vmatprep.subr.mxu0 %v236
        %607 = vmatpush1.msra.mxu0 %v235
        %608 = vmatprep.subr.mxu0 %v238
        %609 = vmatpush1.msra.mxu0 %v237
        %610 = vmatprep.subr.mxu0 %v240
        %611 = vmatpush1.msra.mxu0 %v239
        %612 = vmatprep.subr.mxu0 %v242
        %613 = vmatpush1.msra.mxu0 %v241
        %614 = vmatprep.subr.mxu0 %v244
        %615 = vmatpush1.msra.mxu0 %v243
        %616 = vmatprep.subr.mxu0 %v246
        %617 = vmatpush1.msra.mxu0 %v245
        %618 = vmatprep.subr.mxu0 %v248
        %619 = vmatpush1.msra.mxu0 %v247
        %620 = vmatprep.subr.mxu0 %v250
        %621 = vmatpush1.msra.mxu0 %v249
        %622 = vmatprep.subr.mxu0 %v252
        %623 = vmatpush1.msra.mxu0 %v251
        %624 = vmatprep.subr.mxu0 %v254
        %625 = vmatpush1.msra.mxu0 %v253
        %626 = vmatprep.subr.mxu0 %v256
        %627 = vmatpush1.msra.mxu0 %v255
        %628 = vmatprep.subr.mxu0 %v258
        %629 = vmatpush1.msra.mxu0 %v257
        %630 = vmatprep.subr.mxu0 %v260
        %631 = vmatpush1.msra.mxu0 %v259
        %632 = vmatprep.subr.mxu0 %v262
        %633 = vmatpush1.msra.mxu0 %v261
        %634 = vmatprep.subr.mxu0 %v264
        %635 = vmatpush1.msra.mxu0 %v263
        %636 = vmatprep.subr.mxu0 %v266
        %637 = vmatpush1.msra.mxu0 %v265
        %638 = vmatprep.subr.mxu0 %v268
        %639 = vmatpush1.msra.mxu0 %v267
        %640 = vmatprep.subr.mxu0 %v270
        %641 = vmatpush1.msra.mxu0 %v269
        %642 = vmatprep.subr.mxu0 %v272
        %643 = vmatpush1.msra.mxu0 %v271
        %644 = vmatprep.subr.mxu0 %v274
        %645 = vmatpush1.msra.mxu0 %v273
        %646 = vmatprep.subr.mxu0 %v276
        %647 = vmatpush1.msra.mxu0 %v275
        %648 = vmatprep.subr.mxu0 %v278
        %649 = vmatpush1.msra.mxu0 %v277
        %650 = vmatprep.subr.mxu0 %v280
        %651 = vmatpush1.msra.mxu0 %v279
        %652 = vmatprep.subr.mxu0 %v282
        %653 = vmatpush1.msra.mxu0 %v281
        %654 = vmatprep.subr.mxu0 %v284
        %655 = vmatpush1.msra.mxu0 %v283
        %656 = vmatprep.mubr.f32.mxu0 %v575
        %657 = vmatmul.mubr.f32.gmra.mrb[0].mxu0 %v574
        %v658 = vpop.f32.mrb[0].mxu0
        %v659 = vadd.f32 0.0, %v658
        %v660 = vpop.f32.mrb[0].mxu0
        %v661 = vadd.f32 0.0, %v660
        %662 = vmatprep.mubr.f32.mxu0 %v578
        %663 = vmatmul.mubr.f32.gmra.mrb[0].mxu0 %v577
        %v664 = vpop.f32.mrb[0].mxu0
        %v665 = vadd.f32 0.0, %v664
        %v666 = vpop.f32.mrb[0].mxu0
        %v667 = vadd.f32 0.0, %v666
        %668 = vmatprep.mubr.f32.mxu0 %v581
        %669 = vmatmul.mubr.f32.gmra.mrb[0].mxu0 %v580
        %v670 = vpop.f32.mrb[0].mxu0
        %v671 = vadd.f32 0.0, %v670
        %v672 = vpop.f32.mrb[0].mxu0
        %v673 = vadd.f32 0.0, %v672
        %674 = vdwg.mxu0
        %675 = vmatprep.subr.mxu0 %v286
        %676 = vmatpush1.msra.mxu0 %v285
        %677 = vmatprep.subr.mxu0 %v288
        %678 = vmatpush1.msra.mxu0 %v287
        %679 = vmatprep.subr.mxu0 %v290
        %680 = vmatpush1.msra.mxu0 %v289
        %681 = vmatprep.subr.mxu0 %v292
        %682 = vmatpush1.msra.mxu0 %v291
        %683 = vmatprep.subr.mxu0 %v294
        %684 = vmatpush1.msra.mxu0 %v293
        %685 = vmatprep.subr.mxu0 %v296
        %686 = vmatpush1.msra.mxu0 %v295
        %687 = vmatprep.subr.mxu0 %v298
        %688 = vmatpush1.msra.mxu0 %v297
        %689 = vmatprep.subr.mxu0 %v300
        %690 = vmatpush1.msra.mxu0 %v299
        %691 = vmatprep.subr.mxu0 %v302
        %692 = vmatpush1.msra.mxu0 %v301
        %693 = vmatprep.subr.mxu0 %v304
        %694 = vmatpush1.msra.mxu0 %v303
        %695 = vmatprep.subr.mxu0 %v306
        %696 = vmatpush1.msra.mxu0 %v305
        %697 = vmatprep.subr.mxu0 %v308
        %698 = vmatpush1.msra.mxu0 %v307
        %699 = vmatprep.subr.mxu0 %v310
        %700 = vmatpush1.msra.mxu0 %v309
        %701 = vmatprep.subr.mxu0 0.0
        %702 = vmatpush1.msra.mxu0 0.0
        %703 = vmatprep.subr.mxu0 0.0
        %704 = vmatpush1.msra.mxu0 0.0
        %705 = vmatprep.subr.mxu0 0.0
        %706 = vmatpush1.msra.mxu0 0.0
        %707 = vmatprep.subr.mxu0 0.0
        %708 = vmatpush1.msra.mxu0 0.0
        %709 = vmatprep.subr.mxu0 0.0
        %710 = vmatpush1.msra.mxu0 0.0
        %711 = vmatprep.subr.mxu0 0.0
        %712 = vmatpush1.msra.mxu0 0.0
        %713 = vmatprep.subr.mxu0 0.0
        %714 = vmatpush1.msra.mxu0 0.0
        %715 = vmatprep.subr.mxu0 0.0
        %716 = vmatpush1.msra.mxu0 0.0
        %717 = vmatprep.subr.mxu0 0.0
        %718 = vmatpush1.msra.mxu0 0.0
        %719 = vmatprep.subr.mxu0 0.0
        %720 = vmatpush1.msra.mxu0 0.0
        %721 = vmatprep.subr.mxu0 0.0
        %722 = vmatpush1.msra.mxu0 0.0
        %723 = vmatprep.subr.mxu0 0.0
        %724 = vmatpush1.msra.mxu0 0.0
        %725 = vmatprep.subr.mxu0 0.0
        %726 = vmatpush1.msra.mxu0 0.0
        %727 = vmatprep.subr.mxu0 0.0
        %728 = vmatpush1.msra.mxu0 0.0
        %729 = vmatprep.subr.mxu0 0.0
        %730 = vmatpush1.msra.mxu0 0.0
        %731 = vmatprep.subr.mxu0 0.0
        %732 = vmatpush1.msra.mxu0 0.0
        %733 = vmatprep.subr.mxu0 0.0
        %734 = vmatpush1.msra.mxu0 0.0
        %735 = vmatprep.subr.mxu0 0.0
        %736 = vmatpush1.msra.mxu0 0.0
        %737 = vmatprep.subr.mxu0 0.0
        %738 = vmatpush1.msra.mxu0 0.0
        %739 = vmatprep.mubr.f32.mxu0 0.0
        %740 = vmatmul.mubr.f32.gmra.mrb[0].mxu0 %v584
        %v741 = vpop.f32.mrb[0].mxu0
        %v742 = vadd.f32 %v659, %v741
        %v743 = vpop.f32.mrb[0].mxu0
        %v744 = vadd.f32 %v661, %v743
        %745 = vmatprep.mubr.f32.mxu0 0.0
        %746 = vmatmul.mubr.f32.gmra.mrb[0].mxu0 %v587
        %v747 = vpop.f32.mrb[0].mxu0
        %v748 = vadd.f32 %v665, %v747
        %v749 = vpop.f32.mrb[0].mxu0
        %v750 = vadd.f32 %v667, %v749
        %751 = vmatprep.mubr.f32.mxu0 0.0
        %752 = vmatmul.mubr.f32.gmra.mrb[0].mxu0 %v590
        %v753 = vpop.f32.mrb[0].mxu0
        %v754 = vadd.f32 %v671, %v753
        %v755 = vpop.f32.mrb[0].mxu0
        %v756 = vadd.f32 %v673, %v755
        %757 = vdwg.mxu0
        %758 = vmatprep.subr.mxu0 %v744
        %759 = vmatpush1.msra.mxu0 %v742
        %760 = vmatprep.subr.mxu0 %v750
        %761 = vmatpush1.msra.mxu0 %v748
        %762 = vmatprep.subr.mxu0 %v756
        %763 = vmatpush1.msra.mxu0 %v754
        %764 = vmatprep.subr.mxu0 0.0
        %765 = vmatpush1.msra.mxu0 0.0
        %766 = vmatprep.subr.mxu0 0.0
        %767 = vmatpush1.msra.mxu0 0.0
        %768 = vmatprep.subr.mxu0 0.0
        %769 = vmatpush1.msra.mxu0 0.0
        %770 = vmatprep.subr.mxu0 0.0
        %771 = vmatpush1.msra.mxu0 0.0
        %772 = vmatprep.subr.mxu0 0.0
        %773 = vmatpush1.msra.mxu0 0.0
        %774 = vmatprep.subr.mxu0 0.0
        %775 = vmatpush1.msra.mxu0 0.0
        %776 = vmatprep.subr.mxu0 0.0
        %777 = vmatpush1.msra.mxu0 0.0
        %778 = vmatprep.subr.mxu0 0.0
        %779 = vmatpush1.msra.mxu0 0.0
        %780 = vmatprep.subr.mxu0 0.0
        %781 = vmatpush1.msra.mxu0 0.0
        %782 = vmatprep.subr.mxu0 0.0
        %783 = vmatpush1.msra.mxu0 0.0
        %784 = vmatprep.subr.mxu0 0.0
        %785 = vmatpush1.msra.mxu0 0.0
        %786 = vmatprep.subr.mxu0 0.0
        %787 = vmatpush1.msra.mxu0 0.0
        %788 = vmatprep.subr.mxu0 0.0
        %789 = vmatpush1.msra.mxu0 0.0
        %790 = vmatprep.subr.mxu0 0.0
        %791 = vmatpush1.msra.mxu0 0.0
        %792 = vmatprep.subr.mxu0 0.0
        %793 = vmatpush1.msra.mxu0 0.0
        %794 = vmatprep.subr.mxu0 0.0
        %795 = vmatpush1.msra.mxu0 0.0
        %796 = vmatprep.subr.mxu0 0.0
        %797 = vmatpush1.msra.mxu0 0.0
        %798 = vmatprep.subr.mxu0 0.0
        %799 = vmatpush1.msra.mxu0 0.0
        %800 = vmatprep.subr.mxu0 0.0
        %801 = vmatpush1.msra.mxu0 0.0
        %802 = vmatprep.subr.mxu0 0.0
        %803 = vmatpush1.msra.mxu0 0.0
        %804 = vmatprep.subr.mxu0 0.0
        %805 = vmatpush1.msra.mxu0 0.0
        %806 = vmatprep.subr.mxu0 0.0
        %807 = vmatpush1.msra.mxu0 0.0
        %808 = vmatprep.subr.mxu0 0.0
        %809 = vmatpush1.msra.mxu0 0.0
        %810 = vmatprep.subr.mxu0 0.0
        %811 = vmatpush1.msra.mxu0 0.0
        %812 = vmatprep.subr.mxu0 0.0
        %813 = vmatpush1.msra.mxu0 0.0
        %814 = vmatprep.subr.mxu0 0.0
        %815 = vmatpush1.msra.mxu0 0.0
        %816 = vmatprep.subr.mxu0 0.0
        %817 = vmatpush1.msra.mxu0 0.0
        %818 = vmatprep.subr.mxu0 0.0
        %819 = vmatpush1.msra.mxu0 0.0
        %820 = vmatprep.subr.mxu0 0.0
        %821 = vmatpush1.msra.mxu0 0.0
        %822 = vmatprep.mubr.f32.mxu0 0.0
        %823 = vmatmul.mubr.f32.gmra.mrb[0].mxu0 %v491
        %v824 = vpop.f32.mrb[0].mxu0
        %v825 = vadd.f32 0.0, %v824
        %v826 = vpop.f32.mrb[0].mxu0
        %v827 = vadd.f32 0.0, %v826
        %828 = vmatprep.mubr.f32.mxu0 0.0
        %829 = vmatmul.mubr.f32.gmra.mrb[0].mxu0 %v494
        %v830 = vpop.f32.mrb[0].mxu0
        %v831 = vadd.f32 0.0, %v830
        %v832 = vpop.f32.mrb[0].mxu0
        %v833 = vadd.f32 0.0, %v832
        %834 = vdwg.mxu0
        %s835 = scalar_lea.vmem %s206, 144
        %v836 = vld [vmem:[%s835] sm:$0xff]
        %v837 = vld [vmem:[%s835 + $0x8] sm:$0xff]
        %v838 = vld [vmem:[%s835 + $0x10] sm:$0xff]
        %v839 = vld [vmem:[%s835 + $0x18] sm:$0xff]
        %v840 = vld [vmem:[%s835 + $0x20] sm:$0xff]
        %v841 = vld [vmem:[%s835 + $0x28] sm:$0xff]
        %v842 = vld [vmem:[%s835 + $0x30] sm:$0xff]
        %v843 = vld [vmem:[%s835 + $0x38] sm:$0xff]
        %v844 = vld [vmem:[%s835 + $0x40] sm:$0xff]
        %v846 = vsel %vm311, %v838, 0
        %v849 = vsel %vm311, %v841, 0
        %v852 = vsel %vm311, %v844, 0
        %854 = vmatprep.subr.mxu0 %v222
        %855 = vmatpush1.msra.mxu0 %v221
        %856 = vmatprep.subr.mxu0 %v224
        %857 = vmatpush1.msra.mxu0 %v223
        %858 = vmatprep.subr.mxu0 %v226
        %859 = vmatpush1.msra.mxu0 %v225
        %860 = vmatprep.subr.mxu0 %v228
        %861 = vmatpush1.msra.mxu0 %v227
        %862 = vmatprep.subr.mxu0 %v230
        %863 = vmatpush1.msra.mxu0 %v229
        %864 = vmatprep.subr.mxu0 %v232
        %865 = vmatpush1.msra.mxu0 %v231
        %866 = vmatprep.subr.mxu0 %v234
        %867 = vmatpush1.msra.mxu0 %v233
        %868 = vmatprep.subr.mxu0 %v236
        %869 = vmatpush1.msra.mxu0 %v235
        %870 = vmatprep.subr.mxu0 %v238
        %871 = vmatpush1.msra.mxu0 %v237
        %872 = vmatprep.subr.mxu0 %v240
        %873 = vmatpush1.msra.mxu0 %v239
        %874 = vmatprep.subr.mxu0 %v242
        %875 = vmatpush1.msra.mxu0 %v241
        %876 = vmatprep.subr.mxu0 %v244
        %877 = vmatpush1.msra.mxu0 %v243
        %878 = vmatprep.subr.mxu0 %v246
        %879 = vmatpush1.msra.mxu0 %v245
        %880 = vmatprep.subr.mxu0 %v248
        %881 = vmatpush1.msra.mxu0 %v247
        %882 = vmatprep.subr.mxu0 %v250
        %883 = vmatpush1.msra.mxu0 %v249
        %884 = vmatprep.subr.mxu0 %v252
        %885 = vmatpush1.msra.mxu0 %v251
        %886 = vmatprep.subr.mxu0 %v254
        %887 = vmatpush1.msra.mxu0 %v253
        %888 = vmatprep.subr.mxu0 %v256
        %889 = vmatpush1.msra.mxu0 %v255
        %890 = vmatprep.subr.mxu0 %v258
        %891 = vmatpush1.msra.mxu0 %v257
        %892 = vmatprep.subr.mxu0 %v260
        %893 = vmatpush1.msra.mxu0 %v259
        %894 = vmatprep.subr.mxu0 %v262
        %895 = vmatpush1.msra.mxu0 %v261
        %896 = vmatprep.subr.mxu0 %v264
        %897 = vmatpush1.msra.mxu0 %v263
        %898 = vmatprep.subr.mxu0 %v266
        %899 = vmatpush1.msra.mxu0 %v265
        %900 = vmatprep.subr.mxu0 %v268
        %901 = vmatpush1.msra.mxu0 %v267
        %902 = vmatprep.subr.mxu0 %v270
        %903 = vmatpush1.msra.mxu0 %v269
        %904 = vmatprep.subr.mxu0 %v272
        %905 = vmatpush1.msra.mxu0 %v271
        %906 = vmatprep.subr.mxu0 %v274
        %907 = vmatpush1.msra.mxu0 %v273
        %908 = vmatprep.subr.mxu0 %v276
        %909 = vmatpush1.msra.mxu0 %v275
        %910 = vmatprep.subr.mxu0 %v278
        %911 = vmatpush1.msra.mxu0 %v277
        %912 = vmatprep.subr.mxu0 %v280
        %913 = vmatpush1.msra.mxu0 %v279
        %914 = vmatprep.subr.mxu0 %v282
        %915 = vmatpush1.msra.mxu0 %v281
        %916 = vmatprep.subr.mxu0 %v284
        %917 = vmatpush1.msra.mxu0 %v283
        %918 = vmatprep.mubr.f32.mxu0 %v837
        %919 = vmatmul.mubr.f32.gmra.mrb[0].mxu0 %v836
        %v920 = vpop.f32.mrb[0].mxu0
        %v921 = vadd.f32 0.0, %v920
        %v922 = vpop.f32.mrb[0].mxu0
        %v923 = vadd.f32 0.0, %v922
        %924 = vmatprep.mubr.f32.mxu0 %v840
        %925 = vmatmul.mubr.f32.gmra.mrb[0].mxu0 %v839
        %v926 = vpop.f32.mrb[0].mxu0
        %v927 = vadd.f32 0.0, %v926
        %v928 = vpop.f32.mrb[0].mxu0
        %v929 = vadd.f32 0.0, %v928
        %930 = vmatprep.mubr.f32.mxu0 %v843
        %931 = vmatmul.mubr.f32.gmra.mrb[0].mxu0 %v842
        %v932 = vpop.f32.mrb[0].mxu0
        %v933 = vadd.f32 0.0, %v932
        %v934 = vpop.f32.mrb[0].mxu0
        %v935 = vadd.f32 0.0, %v934
        %936 = vdwg.mxu0
        %937 = vmatprep.subr.mxu0 %v286
        %938 = vmatpush1.msra.mxu0 %v285
        %939 = vmatprep.subr.mxu0 %v288
        %940 = vmatpush1.msra.mxu0 %v287
        %941 = vmatprep.subr.mxu0 %v290
        %942 = vmatpush1.msra.mxu0 %v289
        %943 = vmatprep.subr.mxu0 %v292
        %944 = vmatpush1.msra.mxu0 %v291
        %945 = vmatprep.subr.mxu0 %v294
        %946 = vmatpush1.msra.mxu0 %v293
        %947 = vmatprep.subr.mxu0 %v296
        %948 = vmatpush1.msra.mxu0 %v295
        %949 = vmatprep.subr.mxu0 %v298
        %950 = vmatpush1.msra.mxu0 %v297
        %951 = vmatprep.subr.mxu0 %v300
        %952 = vmatpush1.msra.mxu0 %v299
        %953 = vmatprep.subr.mxu0 %v302
        %954 = vmatpush1.msra.mxu0 %v301
        %955 = vmatprep.subr.mxu0 %v304
        %956 = vmatpush1.msra.mxu0 %v303
        %957 = vmatprep.subr.mxu0 %v306
        %958 = vmatpush1.msra.mxu0 %v305
        %959 = vmatprep.subr.mxu0 %v308
        %960 = vmatpush1.msra.mxu0 %v307
        %961 = vmatprep.subr.mxu0 %v310
        %962 = vmatpush1.msra.mxu0 %v309
        %963 = vmatprep.subr.mxu0 0.0
        %964 = vmatpush1.msra.mxu0 0.0
        %965 = vmatprep.subr.mxu0 0.0
        %966 = vmatpush1.msra.mxu0 0.0
        %967 = vmatprep.subr.mxu0 0.0
        %968 = vmatpush1.msra.mxu0 0.0
        %969 = vmatprep.subr.mxu0 0.0
        %970 = vmatpush1.msra.mxu0 0.0
        %971 = vmatprep.subr.mxu0 0.0
        %972 = vmatpush1.msra.mxu0 0.0
        %973 = vmatprep.subr.mxu0 0.0
        %974 = vmatpush1.msra.mxu0 0.0
        %975 = vmatprep.subr.mxu0 0.0
        %976 = vmatpush1.msra.mxu0 0.0
        %977 = vmatprep.subr.mxu0 0.0
        %978 = vmatpush1.msra.mxu0 0.0
        %979 = vmatprep.subr.mxu0 0.0
        %980 = vmatpush1.msra.mxu0 0.0
        %981 = vmatprep.subr.mxu0 0.0
        %982 = vmatpush1.msra.mxu0 0.0
        %983 = vmatprep.subr.mxu0 0.0
        %984 = vmatpush1.msra.mxu0 0.0
        %985 = vmatprep.subr.mxu0 0.0
        %986 = vmatpush1.msra.mxu0 0.0
        %987 = vmatprep.subr.mxu0 0.0
        %988 = vmatpush1.msra.mxu0 0.0
        %989 = vmatprep.subr.mxu0 0.0
        %990 = vmatpush1.msra.mxu0 0.0
        %991 = vmatprep.subr.mxu0 0.0
        %992 = vmatpush1.msra.mxu0 0.0
        %993 = vmatprep.subr.mxu0 0.0
        %994 = vmatpush1.msra.mxu0 0.0
        %995 = vmatprep.subr.mxu0 0.0
        %996 = vmatpush1.msra.mxu0 0.0
        %997 = vmatprep.subr.mxu0 0.0
        %998 = vmatpush1.msra.mxu0 0.0
        %999 = vmatprep.subr.mxu0 0.0
        %1000 = vmatpush1.msra.mxu0 0.0
        %1001 = vmatprep.mubr.f32.mxu0 0.0
        %1002 = vmatmul.mubr.f32.gmra.mrb[0].mxu0 %v846
        %v1003 = vpop.f32.mrb[0].mxu0
        %v1004 = vadd.f32 %v921, %v1003
        %v1005 = vpop.f32.mrb[0].mxu0
        %v1006 = vadd.f32 %v923, %v1005
        %1007 = vmatprep.mubr.f32.mxu0 0.0
        %1008 = vmatmul.mubr.f32.gmra.mrb[0].mxu0 %v849
        %v1009 = vpop.f32.mrb[0].mxu0
        %v1010 = vadd.f32 %v927, %v1009
        %v1011 = vpop.f32.mrb[0].mxu0
        %v1012 = vadd.f32 %v929, %v1011
        %1013 = vmatprep.mubr.f32.mxu0 0.0
        %1014 = vmatmul.mubr.f32.gmra.mrb[0].mxu0 %v852
        %v1015 = vpop.f32.mrb[0].mxu0
        %v1016 = vadd.f32 %v933, %v1015
        %v1017 = vpop.f32.mrb[0].mxu0
        %v1018 = vadd.f32 %v935, %v1017
        %1019 = vdwg.mxu0
        %1020 = vmatprep.subr.mxu0 %v1006
        %1021 = vmatpush1.msra.mxu0 %v1004
        %1022 = vmatprep.subr.mxu0 %v1012
        %1023 = vmatpush1.msra.mxu0 %v1010
        %1024 = vmatprep.subr.mxu0 %v1018
        %1025 = vmatpush1.msra.mxu0 %v1016
        %1026 = vmatprep.subr.mxu0 0.0
        %1027 = vmatpush1.msra.mxu0 0.0
        %1028 = vmatprep.subr.mxu0 0.0
        %1029 = vmatpush1.msra.mxu0 0.0
        %1030 = vmatprep.subr.mxu0 0.0
        %1031 = vmatpush1.msra.mxu0 0.0
        %1032 = vmatprep.subr.mxu0 0.0
        %1033 = vmatpush1.msra.mxu0 0.0
        %1034 = vmatprep.subr.mxu0 0.0
        %1035 = vmatpush1.msra.mxu0 0.0
        %1036 = vmatprep.subr.mxu0 0.0
        %1037 = vmatpush1.msra.mxu0 0.0
        %1038 = vmatprep.subr.mxu0 0.0
        %1039 = vmatpush1.msra.mxu0 0.0
        %1040 = vmatprep.subr.mxu0 0.0
        %1041 = vmatpush1.msra.mxu0 0.0
        %1042 = vmatprep.subr.mxu0 0.0
        %1043 = vmatpush1.msra.mxu0 0.0
        %1044 = vmatprep.subr.mxu0 0.0
        %1045 = vmatpush1.msra.mxu0 0.0
        %1046 = vmatprep.subr.mxu0 0.0
        %1047 = vmatpush1.msra.mxu0 0.0
        %1048 = vmatprep.subr.mxu0 0.0
        %1049 = vmatpush1.msra.mxu0 0.0
        %1050 = vmatprep.subr.mxu0 0.0
        %1051 = vmatpush1.msra.mxu0 0.0
        %1052 = vmatprep.subr.mxu0 0.0
        %1053 = vmatpush1.msra.mxu0 0.0
        %1054 = vmatprep.subr.mxu0 0.0
        %1055 = vmatpush1.msra.mxu0 0.0
        %1056 = vmatprep.subr.mxu0 0.0
        %1057 = vmatpush1.msra.mxu0 0.0
        %1058 = vmatprep.subr.mxu0 0.0
        %1059 = vmatpush1.msra.mxu0 0.0
        %1060 = vmatprep.subr.mxu0 0.0
        %1061 = vmatpush1.msra.mxu0 0.0
        %1062 = vmatprep.subr.mxu0 0.0
        %1063 = vmatpush1.msra.mxu0 0.0
        %1064 = vmatprep.subr.mxu0 0.0
        %1065 = vmatpush1.msra.mxu0 0.0
        %1066 = vmatprep.subr.mxu0 0.0
        %1067 = vmatpush1.msra.mxu0 0.0
        %1068 = vmatprep.subr.mxu0 0.0
        %1069 = vmatpush1.msra.mxu0 0.0
        %1070 = vmatprep.subr.mxu0 0.0
        %1071 = vmatpush1.msra.mxu0 0.0
        %1072 = vmatprep.subr.mxu0 0.0
        %1073 = vmatpush1.msra.mxu0 0.0
        %1074 = vmatprep.subr.mxu0 0.0
        %1075 = vmatpush1.msra.mxu0 0.0
        %1076 = vmatprep.subr.mxu0 0.0
        %1077 = vmatpush1.msra.mxu0 0.0
        %1078 = vmatprep.subr.mxu0 0.0
        %1079 = vmatpush1.msra.mxu0 0.0
        %1080 = vmatprep.subr.mxu0 0.0
        %1081 = vmatpush1.msra.mxu0 0.0
        %1082 = vmatprep.subr.mxu0 0.0
        %1083 = vmatpush1.msra.mxu0 0.0
        %1084 = vmatprep.mubr.f32.mxu0 0.0
        %1085 = vmatmul.mubr.f32.gmra.mrb[0].mxu0 %v491
        %v1086 = vpop.f32.mrb[0].mxu0
        %v1087 = vadd.f32 0.0, %v1086
        %v1088 = vpop.f32.mrb[0].mxu0
        %v1089 = vadd.f32 0.0, %v1088
        %1090 = vmatprep.mubr.f32.mxu0 0.0
        %1091 = vmatmul.mubr.f32.gmra.mrb[0].mxu0 %v494
        %v1092 = vpop.f32.mrb[0].mxu0
        %v1093 = vadd.f32 0.0, %v1092
        %v1094 = vpop.f32.mrb[0].mxu0
        %v1095 = vadd.f32 0.0, %v1094
        %1096 = vdwg.mxu0
        %s1097 = scalar_lea.vmem %s206, 216
        %v1098 = vld [vmem:[%s1097] sm:$0xff]
        %v1099 = vld [vmem:[%s1097 + $0x8] sm:$0xff]
        %v1100 = vld [vmem:[%s1097 + $0x10] sm:$0xff]
        %v1101 = vld [vmem:[%s1097 + $0x18] sm:$0xff]
        %v1102 = vld [vmem:[%s1097 + $0x20] sm:$0xff]
        %v1103 = vld [vmem:[%s1097 + $0x28] sm:$0xff]
        %v1104 = vld [vmem:[%s1097 + $0x30] sm:$0xff]
        %v1105 = vld [vmem:[%s1097 + $0x38] sm:$0xff]
        %v1106 = vld [vmem:[%s1097 + $0x40] sm:$0xff]
        %v1108 = vsel %vm311, %v1100, 0
        %v1111 = vsel %vm311, %v1103, 0
        %v1114 = vsel %vm311, %v1106, 0
        %1116 = vmatprep.subr.mxu0 %v222
        %1117 = vmatpush1.msra.mxu0 %v221
        %1118 = vmatprep.subr.mxu0 %v224
        %1119 = vmatpush1.msra.mxu0 %v223
        %1120 = vmatprep.subr.mxu0 %v226
        %1121 = vmatpush1.msra.mxu0 %v225
        %1122 = vmatprep.subr.mxu0 %v228
        %1123 = vmatpush1.msra.mxu0 %v227
        %1124 = vmatprep.subr.mxu0 %v230
        %1125 = vmatpush1.msra.mxu0 %v229
        %1126 = vmatprep.subr.mxu0 %v232
        %1127 = vmatpush1.msra.mxu0 %v231
        %1128 = vmatprep.subr.mxu0 %v234
        %1129 = vmatpush1.msra.mxu0 %v233
        %1130 = vmatprep.subr.mxu0 %v236
        %1131 = vmatpush1.msra.mxu0 %v235
        %1132 = vmatprep.subr.mxu0 %v238
        %1133 = vmatpush1.msra.mxu0 %v237
        %1134 = vmatprep.subr.mxu0 %v240
        %1135 = vmatpush1.msra.mxu0 %v239
        %1136 = vmatprep.subr.mxu0 %v242
        %1137 = vmatpush1.msra.mxu0 %v241
        %1138 = vmatprep.subr.mxu0 %v244
        %1139 = vmatpush1.msra.mxu0 %v243
        %1140 = vmatprep.subr.mxu0 %v246
        %1141 = vmatpush1.msra.mxu0 %v245
        %1142 = vmatprep.subr.mxu0 %v248
        %1143 = vmatpush1.msra.mxu0 %v247
        %1144 = vmatprep.subr.mxu0 %v250
        %1145 = vmatpush1.msra.mxu0 %v249
        %1146 = vmatprep.subr.mxu0 %v252
        %1147 = vmatpush1.msra.mxu0 %v251
        %1148 = vmatprep.subr.mxu0 %v254
        %1149 = vmatpush1.msra.mxu0 %v253
        %1150 = vmatprep.subr.mxu0 %v256
        %1151 = vmatpush1.msra.mxu0 %v255
        %1152 = vmatprep.subr.mxu0 %v258
        %1153 = vmatpush1.msra.mxu0 %v257
        %1154 = vmatprep.subr.mxu0 %v260
        %1155 = vmatpush1.msra.mxu0 %v259
        %1156 = vmatprep.subr.mxu0 %v262
        %1157 = vmatpush1.msra.mxu0 %v261
        %1158 = vmatprep.subr.mxu0 %v264
        %1159 = vmatpush1.msra.mxu0 %v263
        %1160 = vmatprep.subr.mxu0 %v266
        %1161 = vmatpush1.msra.mxu0 %v265
        %1162 = vmatprep.subr.mxu0 %v268
        %1163 = vmatpush1.msra.mxu0 %v267
        %1164 = vmatprep.subr.mxu0 %v270
        %1165 = vmatpush1.msra.mxu0 %v269
        %1166 = vmatprep.subr.mxu0 %v272
        %1167 = vmatpush1.msra.mxu0 %v271
        %1168 = vmatprep.subr.mxu0 %v274
        %1169 = vmatpush1.msra.mxu0 %v273
        %1170 = vmatprep.subr.mxu0 %v276
        %1171 = vmatpush1.msra.mxu0 %v275
        %1172 = vmatprep.subr.mxu0 %v278
        %1173 = vmatpush1.msra.mxu0 %v277
        %1174 = vmatprep.subr.mxu0 %v280
        %1175 = vmatpush1.msra.mxu0 %v279
        %1176 = vmatprep.subr.mxu0 %v282
        %1177 = vmatpush1.msra.mxu0 %v281
        %1178 = vmatprep.subr.mxu0 %v284
        %1179 = vmatpush1.msra.mxu0 %v283
        %1180 = vmatprep.mubr.f32.mxu0 %v1099
        %1181 = vmatmul.mubr.f32.gmra.mrb[0].mxu0 %v1098
        %v1182 = vpop.f32.mrb[0].mxu0
        %v1183 = vadd.f32 0.0, %v1182
        %v1184 = vpop.f32.mrb[0].mxu0
        %v1185 = vadd.f32 0.0, %v1184
        %1186 = vmatprep.mubr.f32.mxu0 %v1102
        %1187 = vmatmul.mubr.f32.gmra.mrb[0].mxu0 %v1101
        %v1188 = vpop.f32.mrb[0].mxu0
        %v1189 = vadd.f32 0.0, %v1188
        %v1190 = vpop.f32.mrb[0].mxu0
        %v1191 = vadd.f32 0.0, %v1190
        %1192 = vmatprep.mubr.f32.mxu0 %v1105
        %1193 = vmatmul.mubr.f32.gmra.mrb[0].mxu0 %v1104
        %v1194 = vpop.f32.mrb[0].mxu0
        %v1195 = vadd.f32 0.0, %v1194
        %v1196 = vpop.f32.mrb[0].mxu0
        %v1197 = vadd.f32 0.0, %v1196
        %1198 = vdwg.mxu0
        %1199 = vmatprep.subr.mxu0 %v286
        %1200 = vmatpush1.msra.mxu0 %v285
        %1201 = vmatprep.subr.mxu0 %v288
        %1202 = vmatpush1.msra.mxu0 %v287
        %1203 = vmatprep.subr.mxu0 %v290
        %1204 = vmatpush1.msra.mxu0 %v289
        %1205 = vmatprep.subr.mxu0 %v292
        %1206 = vmatpush1.msra.mxu0 %v291
        %1207 = vmatprep.subr.mxu0 %v294
        %1208 = vmatpush1.msra.mxu0 %v293
        %1209 = vmatprep.subr.mxu0 %v296
        %1210 = vmatpush1.msra.mxu0 %v295
        %1211 = vmatprep.subr.mxu0 %v298
        %1212 = vmatpush1.msra.mxu0 %v297
        %1213 = vmatprep.subr.mxu0 %v300
        %1214 = vmatpush1.msra.mxu0 %v299
        %1215 = vmatprep.subr.mxu0 %v302
        %1216 = vmatpush1.msra.mxu0 %v301
        %1217 = vmatprep.subr.mxu0 %v304
        %1218 = vmatpush1.msra.mxu0 %v303
        %1219 = vmatprep.subr.mxu0 %v306
        %1220 = vmatpush1.msra.mxu0 %v305
        %1221 = vmatprep.subr.mxu0 %v308
        %1222 = vmatpush1.msra.mxu0 %v307
        %1223 = vmatprep.subr.mxu0 %v310
        %1224 = vmatpush1.msra.mxu0 %v309
        %1225 = vmatprep.subr.mxu0 0.0
        %1226 = vmatpush1.msra.mxu0 0.0
        %1227 = vmatprep.subr.mxu0 0.0
        %1228 = vmatpush1.msra.mxu0 0.0
        %1229 = vmatprep.subr.mxu0 0.0
        %1230 = vmatpush1.msra.mxu0 0.0
        %1231 = vmatprep.subr.mxu0 0.0
        %1232 = vmatpush1.msra.mxu0 0.0
        %1233 = vmatprep.subr.mxu0 0.0
        %1234 = vmatpush1.msra.mxu0 0.0
        %1235 = vmatprep.subr.mxu0 0.0
        %1236 = vmatpush1.msra.mxu0 0.0
        %1237 = vmatprep.subr.mxu0 0.0
        %1238 = vmatpush1.msra.mxu0 0.0
        %1239 = vmatprep.subr.mxu0 0.0
        %1240 = vmatpush1.msra.mxu0 0.0
        %1241 = vmatprep.subr.mxu0 0.0
        %1242 = vmatpush1.msra.mxu0 0.0
        %1243 = vmatprep.subr.mxu0 0.0
        %1244 = vmatpush1.msra.mxu0 0.0
        %1245 = vmatprep.subr.mxu0 0.0
        %1246 = vmatpush1.msra.mxu0 0.0
        %1247 = vmatprep.subr.mxu0 0.0
        %1248 = vmatpush1.msra.mxu0 0.0
        %1249 = vmatprep.subr.mxu0 0.0
        %1250 = vmatpush1.msra.mxu0 0.0
        %1251 = vmatprep.subr.mxu0 0.0
        %1252 = vmatpush1.msra.mxu0 0.0
        %1253 = vmatprep.subr.mxu0 0.0
        %1254 = vmatpush1.msra.mxu0 0.0
        %1255 = vmatprep.subr.mxu0 0.0
        %1256 = vmatpush1.msra.mxu0 0.0
        %1257 = vmatprep.subr.mxu0 0.0
        %1258 = vmatpush1.msra.mxu0 0.0
        %1259 = vmatprep.subr.mxu0 0.0
        %1260 = vmatpush1.msra.mxu0 0.0
        %1261 = vmatprep.subr.mxu0 0.0
        %1262 = vmatpush1.msra.mxu0 0.0
        %1263 = vmatprep.mubr.f32.mxu0 0.0
        %1264 = vmatmul.mubr.f32.gmra.mrb[0].mxu0 %v1108
        %v1265 = vpop.f32.mrb[0].mxu0
        %v1266 = vadd.f32 %v1183, %v1265
        %v1267 = vpop.f32.mrb[0].mxu0
        %v1268 = vadd.f32 %v1185, %v1267
        %1269 = vmatprep.mubr.f32.mxu0 0.0
        %1270 = vmatmul.mubr.f32.gmra.mrb[0].mxu0 %v1111
        %v1271 = vpop.f32.mrb[0].mxu0
        %v1272 = vadd.f32 %v1189, %v1271
        %v1273 = vpop.f32.mrb[0].mxu0
        %v1274 = vadd.f32 %v1191, %v1273
        %1275 = vmatprep.mubr.f32.mxu0 0.0
        %1276 = vmatmul.mubr.f32.gmra.mrb[0].mxu0 %v1114
        %v1277 = vpop.f32.mrb[0].mxu0
        %v1278 = vadd.f32 %v1195, %v1277
        %v1279 = vpop.f32.mrb[0].mxu0
        %v1280 = vadd.f32 %v1197, %v1279
        %1281 = vdwg.mxu0
        %1282 = vmatprep.subr.mxu0 %v1268
        %1283 = vmatpush1.msra.mxu0 %v1266
        %1284 = vmatprep.subr.mxu0 %v1274
        %1285 = vmatpush1.msra.mxu0 %v1272
        %1286 = vmatprep.subr.mxu0 %v1280
        %1287 = vmatpush1.msra.mxu0 %v1278
        %1288 = vmatprep.subr.mxu0 0.0
        %1289 = vmatpush1.msra.mxu0 0.0
        %1290 = vmatprep.subr.mxu0 0.0
        %1291 = vmatpush1.msra.mxu0 0.0
        %1292 = vmatprep.subr.mxu0 0.0
        %1293 = vmatpush1.msra.mxu0 0.0
        %1294 = vmatprep.subr.mxu0 0.0
        %1295 = vmatpush1.msra.mxu0 0.0
        %1296 = vmatprep.subr.mxu0 0.0
        %1297 = vmatpush1.msra.mxu0 0.0
        %1298 = vmatprep.subr.mxu0 0.0
        %1299 = vmatpush1.msra.mxu0 0.0
        %1300 = vmatprep.subr.mxu0 0.0
        %1301 = vmatpush1.msra.mxu0 0.0
        %1302 = vmatprep.subr.mxu0 0.0
        %1303 = vmatpush1.msra.mxu0 0.0
        %1304 = vmatprep.subr.mxu0 0.0
        %1305 = vmatpush1.msra.mxu0 0.0
        %1306 = vmatprep.subr.mxu0 0.0
        %1307 = vmatpush1.msra.mxu0 0.0
        %1308 = vmatprep.subr.mxu0 0.0
        %1309 = vmatpush1.msra.mxu0 0.0
        %1310 = vmatprep.subr.mxu0 0.0
        %1311 = vmatpush1.msra.mxu0 0.0
        %1312 = vmatprep.subr.mxu0 0.0
        %1313 = vmatpush1.msra.mxu0 0.0
        %1314 = vmatprep.subr.mxu0 0.0
        %1315 = vmatpush1.msra.mxu0 0.0
        %1316 = vmatprep.subr.mxu0 0.0
        %1317 = vmatpush1.msra.mxu0 0.0
        %1318 = vmatprep.subr.mxu0 0.0
        %1319 = vmatpush1.msra.mxu0 0.0
        %1320 = vmatprep.subr.mxu0 0.0
        %1321 = vmatpush1.msra.mxu0 0.0
        %1322 = vmatprep.subr.mxu0 0.0
        %1323 = vmatpush1.msra.mxu0 0.0
        %1324 = vmatprep.subr.mxu0 0.0
        %1325 = vmatpush1.msra.mxu0 0.0
        %1326 = vmatprep.subr.mxu0 0.0
        %1327 = vmatpush1.msra.mxu0 0.0
        %1328 = vmatprep.subr.mxu0 0.0
        %1329 = vmatpush1.msra.mxu0 0.0
        %1330 = vmatprep.subr.mxu0 0.0
        %1331 = vmatpush1.msra.mxu0 0.0
        %1332 = vmatprep.subr.mxu0 0.0
        %1333 = vmatpush1.msra.mxu0 0.0
        %1334 = vmatprep.subr.mxu0 0.0
        %1335 = vmatpush1.msra.mxu0 0.0
        %1336 = vmatprep.subr.mxu0 0.0
        %1337 = vmatpush1.msra.mxu0 0.0
        %1338 = vmatprep.subr.mxu0 0.0
        %1339 = vmatpush1.msra.mxu0 0.0
        %1340 = vmatprep.subr.mxu0 0.0
        %1341 = vmatpush1.msra.mxu0 0.0
        %1342 = vmatprep.subr.mxu0 0.0
        %1343 = vmatpush1.msra.mxu0 0.0
        %1344 = vmatprep.subr.mxu0 0.0
        %1345 = vmatpush1.msra.mxu0 0.0
        %1346 = vmatprep.mubr.f32.mxu0 0.0
        %1347 = vmatmul.mubr.f32.gmra.mrb[0].mxu0 %v491
        %v1348 = vpop.f32.mrb[0].mxu0
        %v1349 = vadd.f32 0.0, %v1348
        %v1350 = vpop.f32.mrb[0].mxu0
        %v1351 = vadd.f32 0.0, %v1350
        %1352 = vmatprep.mubr.f32.mxu0 0.0
        %1353 = vmatmul.mubr.f32.gmra.mrb[0].mxu0 %v494
        %v1354 = vpop.f32.mrb[0].mxu0
        %v1355 = vadd.f32 0.0, %v1354
        %v1356 = vpop.f32.mrb[0].mxu0
        %v1357 = vadd.f32 0.0, %v1356
        %1358 = vdwg.mxu0
        %s1359 = sld [smem:[#allocation2]]
        %v1360 = vstv %s1359
        %v1361 = vmul.f32 %v563, %v1360
        %v1362 = vmul.f32 %v565, %v1360
        %v1363 = vmul.f32 %v569, %v1360
        %v1364 = vmul.f32 %v571, %v1360
        %s1365 = sld [smem:[#allocation2 + $0x1]]
        %v1366 = vstv %s1365
        %v1367 = vmul.f32 %v825, %v1366
        %v1368 = vmul.f32 %v827, %v1366
        %v1369 = vmul.f32 %v831, %v1366
        %v1370 = vmul.f32 %v833, %v1366
        %v1371 = vadd.f32 %v1361, %v1367
        %v1372 = vadd.f32 %v1362, %v1368
        %v1373 = vadd.f32 %v1363, %v1369
        %v1374 = vadd.f32 %v1364, %v1370
        %s1375 = sld [smem:[#allocation2 + $0x2]]
        %v1376 = vstv %s1375
        %v1377 = vmul.f32 %v1087, %v1376
        %v1378 = vmul.f32 %v1089, %v1376
        %v1379 = vmul.f32 %v1093, %v1376
        %v1380 = vmul.f32 %v1095, %v1376
        %v1381 = vadd.f32 %v1371, %v1377
        %v1382 = vadd.f32 %v1372, %v1378
        %v1383 = vadd.f32 %v1373, %v1379
        %v1384 = vadd.f32 %v1374, %v1380
        %s1385 = sld [smem:[#allocation2 + $0x3]]
        %v1386 = vstv %s1385
        %v1387 = vmul.f32 %v1349, %v1386
        %v1388 = vmul.f32 %v1351, %v1386
        %v1389 = vmul.f32 %v1355, %v1386
        %v1390 = vmul.f32 %v1357, %v1386
        %v1391 = vadd.f32 %v1381, %v1387
        %v1392 = vadd.f32 %v1382, %v1388
        %v1393 = vadd.f32 %v1383, %v1389
        %v1394 = vadd.f32 %v1384, %v1390
        %s1395 = sld [smem:[#allocation2 + $0x20]]
        %v1396 = vstv %s1395
        %v1397 = vadd.f32 %v1391, %v1396
        %v1398 = vadd.f32 %v1392, %v1396
        %v1399 = vadd.f32 %v1393, %v1396
        %v1400 = vadd.f32 %v1394, %v1396
        %s1401 = sld [smem:[#allocation2 + $0x28]]
        %v1402 = vstv %s1401
        %v1403 = vmul.f32 %v1397, %v1402
        %v1404 = vmul.f32 %v1398, %v1402
        %v1405 = vmul.f32 %v1399, %v1402
        %v1406 = vmul.f32 %v1400, %v1402
        %s1407 = sld [smem:[#allocation2 + $0x30]]
        %v1408 = vstv %s1407
        %v1409 = vmul.f32 %v1397, %v1408
        %v1410 = vmul.f32 %v1398, %v1408
        %v1411 = vmul.f32 %v1399, %v1408
        %v1412 = vmul.f32 %v1400, %v1408
        %s1413 = sld [smem:[#allocation2 + $0x38]]
        %v1414 = vstv %s1413
        %v1415 = vmul.f32 %v1397, %v1414
        %v1416 = vmul.f32 %v1398, %v1414
        %v1417 = vmul.f32 %v1399, %v1414
        %v1418 = vmul.f32 %v1400, %v1414
        %s1419 = sld [smem:[#allocation2 + $0x40]]
        %v1420 = vstv %s1419
        %v1421 = vmul.f32 %v1397, %v1420
        %v1422 = vmul.f32 %v1398, %v1420
        %v1423 = vmul.f32 %v1399, %v1420
        %v1424 = vmul.f32 %v1400, %v1420
        %s1425 = sld [smem:[#allocation2 + $0x4]]
        %v1426 = vstv %s1425
        %v1427 = vmul.f32 %v563, %v1426
        %v1428 = vmul.f32 %v565, %v1426
        %v1429 = vmul.f32 %v569, %v1426
        %v1430 = vmul.f32 %v571, %v1426
        %s1431 = sld [smem:[#allocation2 + $0x5]]
        %v1432 = vstv %s1431
        %v1433 = vmul.f32 %v825, %v1432
        %v1434 = vmul.f32 %v827, %v1432
        %v1435 = vmul.f32 %v831, %v1432
        %v1436 = vmul.f32 %v833, %v1432
        %v1437 = vadd.f32 %v1427, %v1433
        %v1438 = vadd.f32 %v1428, %v1434
        %v1439 = vadd.f32 %v1429, %v1435
        %v1440 = vadd.f32 %v1430, %v1436
        %s1441 = sld [smem:[#allocation2 + $0x6]]
        %v1442 = vstv %s1441
        %v1443 = vmul.f32 %v1087, %v1442
        %v1444 = vmul.f32 %v1089, %v1442
        %v1445 = vmul.f32 %v1093, %v1442
        %v1446 = vmul.f32 %v1095, %v1442
        %v1447 = vadd.f32 %v1437, %v1443
        %v1448 = vadd.f32 %v1438, %v1444
        %v1449 = vadd.f32 %v1439, %v1445
        %v1450 = vadd.f32 %v1440, %v1446
        %s1451 = sld [smem:[#allocation2 + $0x7]]
        %v1452 = vstv %s1451
        %v1453 = vmul.f32 %v1349, %v1452
        %v1454 = vmul.f32 %v1351, %v1452
        %v1455 = vmul.f32 %v1355, %v1452
        %v1456 = vmul.f32 %v1357, %v1452
        %v1457 = vadd.f32 %v1447, %v1453
        %v1458 = vadd.f32 %v1448, %v1454
        %v1459 = vadd.f32 %v1449, %v1455
        %v1460 = vadd.f32 %v1450, %v1456
        %s1461 = sld [smem:[#allocation2 + $0x21]]
        %v1462 = vstv %s1461
        %v1463 = vadd.f32 %v1457, %v1462
        %v1464 = vadd.f32 %v1458, %v1462
        %v1465 = vadd.f32 %v1459, %v1462
        %v1466 = vadd.f32 %v1460, %v1462
        %s1467 = sld [smem:[#allocation2 + $0x29]]
        %v1468 = vstv %s1467
        %v1469 = vmul.f32 %v1463, %v1468
        %v1470 = vmul.f32 %v1464, %v1468
        %v1471 = vmul.f32 %v1465, %v1468
        %v1472 = vmul.f32 %v1466, %v1468
        %v1473 = vadd.f32 %v1403, %v1469
        %v1474 = vadd.f32 %v1404, %v1470
        %v1475 = vadd.f32 %v1405, %v1471
        %v1476 = vadd.f32 %v1406, %v1472
        %s1477 = sld [smem:[#allocation2 + $0x31]]
        %v1478 = vstv %s1477
        %v1479 = vmul.f32 %v1463, %v1478
        %v1480 = vmul.f32 %v1464, %v1478
        %v1481 = vmul.f32 %v1465, %v1478
        %v1482 = vmul.f32 %v1466, %v1478
        %v1483 = vadd.f32 %v1409, %v1479
        %v1484 = vadd.f32 %v1410, %v1480
        %v1485 = vadd.f32 %v1411, %v1481
        %v1486 = vadd.f32 %v1412, %v1482
        %s1487 = sld [smem:[#allocation2 + $0x39]]
        %v1488 = vstv %s1487
        %v1489 = vmul.f32 %v1463, %v1488
        %v1490 = vmul.f32 %v1464, %v1488
        %v1491 = vmul.f32 %v1465, %v1488
        %v1492 = vmul.f32 %v1466, %v1488
        %v1493 = vadd.f32 %v1415, %v1489
        %v1494 = vadd.f32 %v1416, %v1490
        %v1495 = vadd.f32 %v1417, %v1491
        %v1496 = vadd.f32 %v1418, %v1492
        %s1497 = sld [smem:[#allocation2 + $0x41]]
        %v1498 = vstv %s1497
        %v1499 = vmul.f32 %v1463, %v1498
        %v1500 = vmul.f32 %v1464, %v1498
        %v1501 = vmul.f32 %v1465, %v1498
        %v1502 = vmul.f32 %v1466, %v1498
        %v1503 = vadd.f32 %v1421, %v1499
        %v1504 = vadd.f32 %v1422, %v1500
        %v1505 = vadd.f32 %v1423, %v1501
        %v1506 = vadd.f32 %v1424, %v1502
        %s1507 = sld [smem:[#allocation2 + $0x8]]
        %v1508 = vstv %s1507
        %v1509 = vmul.f32 %v563, %v1508
        %v1510 = vmul.f32 %v565, %v1508
        %v1511 = vmul.f32 %v569, %v1508
        %v1512 = vmul.f32 %v571, %v1508
        %s1513 = sld [smem:[#allocation2 + $0x9]]
        %v1514 = vstv %s1513
        %v1515 = vmul.f32 %v825, %v1514
        %v1516 = vmul.f32 %v827, %v1514
        %v1517 = vmul.f32 %v831, %v1514
        %v1518 = vmul.f32 %v833, %v1514
        %v1519 = vadd.f32 %v1509, %v1515
        %v1520 = vadd.f32 %v1510, %v1516
        %v1521 = vadd.f32 %v1511, %v1517
        %v1522 = vadd.f32 %v1512, %v1518
        %s1523 = sld [smem:[#allocation2 + $0xa]]
        %v1524 = vstv %s1523
        %v1525 = vmul.f32 %v1087, %v1524
        %v1526 = vmul.f32 %v1089, %v1524
        %v1527 = vmul.f32 %v1093, %v1524
        %v1528 = vmul.f32 %v1095, %v1524
        %v1529 = vadd.f32 %v1519, %v1525
        %v1530 = vadd.f32 %v1520, %v1526
        %v1531 = vadd.f32 %v1521, %v1527
        %v1532 = vadd.f32 %v1522, %v1528
        %s1533 = sld [smem:[#allocation2 + $0xb]]
        %v1534 = vstv %s1533
        %v1535 = vmul.f32 %v1349, %v1534
        %v1536 = vmul.f32 %v1351, %v1534
        %v1537 = vmul.f32 %v1355, %v1534
        %v1538 = vmul.f32 %v1357, %v1534
        %v1539 = vadd.f32 %v1529, %v1535
        %v1540 = vadd.f32 %v1530, %v1536
        %v1541 = vadd.f32 %v1531, %v1537
        %v1542 = vadd.f32 %v1532, %v1538
        %s1543 = sld [smem:[#allocation2 + $0x22]]
        %v1544 = vstv %s1543
        %v1545 = vadd.f32 %v1539, %v1544
        %v1546 = vadd.f32 %v1540, %v1544
        %v1547 = vadd.f32 %v1541, %v1544
        %v1548 = vadd.f32 %v1542, %v1544
        %s1549 = sld [smem:[#allocation2 + $0x2a]]
        %v1550 = vstv %s1549
        %v1551 = vmul.f32 %v1545, %v1550
        %v1552 = vmul.f32 %v1546, %v1550
        %v1553 = vmul.f32 %v1547, %v1550
        %v1554 = vmul.f32 %v1548, %v1550
        %v1555 = vadd.f32 %v1473, %v1551
        %v1556 = vadd.f32 %v1474, %v1552
        %v1557 = vadd.f32 %v1475, %v1553
        %v1558 = vadd.f32 %v1476, %v1554
        %s1559 = sld [smem:[#allocation2 + $0x32]]
        %v1560 = vstv %s1559
        %v1561 = vmul.f32 %v1545, %v1560
        %v1562 = vmul.f32 %v1546, %v1560
        %v1563 = vmul.f32 %v1547, %v1560
        %v1564 = vmul.f32 %v1548, %v1560
        %v1565 = vadd.f32 %v1483, %v1561
        %v1566 = vadd.f32 %v1484, %v1562
        %v1567 = vadd.f32 %v1485, %v1563
        %v1568 = vadd.f32 %v1486, %v1564
        %s1569 = sld [smem:[#allocation2 + $0x3a]]
        %v1570 = vstv %s1569
        %v1571 = vmul.f32 %v1545, %v1570
        %v1572 = vmul.f32 %v1546, %v1570
        %v1573 = vmul.f32 %v1547, %v1570
        %v1574 = vmul.f32 %v1548, %v1570
        %v1575 = vadd.f32 %v1493, %v1571
        %v1576 = vadd.f32 %v1494, %v1572
        %v1577 = vadd.f32 %v1495, %v1573
        %v1578 = vadd.f32 %v1496, %v1574
        %s1579 = sld [smem:[#allocation2 + $0x42]]
        %v1580 = vstv %s1579
        %v1581 = vmul.f32 %v1545, %v1580
        %v1582 = vmul.f32 %v1546, %v1580
        %v1583 = vmul.f32 %v1547, %v1580
        %v1584 = vmul.f32 %v1548, %v1580
        %v1585 = vadd.f32 %v1503, %v1581
        %v1586 = vadd.f32 %v1504, %v1582
        %v1587 = vadd.f32 %v1505, %v1583
        %v1588 = vadd.f32 %v1506, %v1584
        %s1589 = sld [smem:[#allocation2 + $0xc]]
        %v1590 = vstv %s1589
        %v1591 = vmul.f32 %v563, %v1590
        %v1592 = vmul.f32 %v565, %v1590
        %v1593 = vmul.f32 %v569, %v1590
        %v1594 = vmul.f32 %v571, %v1590
        %s1595 = sld [smem:[#allocation2 + $0xd]]
        %v1596 = vstv %s1595
        %v1597 = vmul.f32 %v825, %v1596
        %v1598 = vmul.f32 %v827, %v1596
        %v1599 = vmul.f32 %v831, %v1596
        %v1600 = vmul.f32 %v833, %v1596
        %v1601 = vadd.f32 %v1591, %v1597
        %v1602 = vadd.f32 %v1592, %v1598
        %v1603 = vadd.f32 %v1593, %v1599
        %v1604 = vadd.f32 %v1594, %v1600
        %s1605 = sld [smem:[#allocation2 + $0xe]]
        %v1606 = vstv %s1605
        %v1607 = vmul.f32 %v1087, %v1606
        %v1608 = vmul.f32 %v1089, %v1606
        %v1609 = vmul.f32 %v1093, %v1606
        %v1610 = vmul.f32 %v1095, %v1606
        %v1611 = vadd.f32 %v1601, %v1607
        %v1612 = vadd.f32 %v1602, %v1608
        %v1613 = vadd.f32 %v1603, %v1609
        %v1614 = vadd.f32 %v1604, %v1610
        %s1615 = sld [smem:[#allocation2 + $0xf]]
        %v1616 = vstv %s1615
        %v1617 = vmul.f32 %v1349, %v1616
        %v1618 = vmul.f32 %v1351, %v1616
        %v1619 = vmul.f32 %v1355, %v1616
        %v1620 = vmul.f32 %v1357, %v1616
        %v1621 = vadd.f32 %v1611, %v1617
        %v1622 = vadd.f32 %v1612, %v1618
        %v1623 = vadd.f32 %v1613, %v1619
        %v1624 = vadd.f32 %v1614, %v1620
        %s1625 = sld [smem:[#allocation2 + $0x23]]
        %v1626 = vstv %s1625
        %v1627 = vadd.f32 %v1621, %v1626
        %v1628 = vadd.f32 %v1622, %v1626
        %v1629 = vadd.f32 %v1623, %v1626
        %v1630 = vadd.f32 %v1624, %v1626
        %s1631 = sld [smem:[#allocation2 + $0x2b]]
        %v1632 = vstv %s1631
        %v1633 = vmul.f32 %v1627, %v1632
        %v1634 = vmul.f32 %v1628, %v1632
        %v1635 = vmul.f32 %v1629, %v1632
        %v1636 = vmul.f32 %v1630, %v1632
        %v1637 = vadd.f32 %v1555, %v1633
        %v1638 = vadd.f32 %v1556, %v1634
        %v1639 = vadd.f32 %v1557, %v1635
        %v1640 = vadd.f32 %v1558, %v1636
        %s1641 = sld [smem:[#allocation2 + $0x33]]
        %v1642 = vstv %s1641
        %v1643 = vmul.f32 %v1627, %v1642
        %v1644 = vmul.f32 %v1628, %v1642
        %v1645 = vmul.f32 %v1629, %v1642
        %v1646 = vmul.f32 %v1630, %v1642
        %v1647 = vadd.f32 %v1565, %v1643
        %v1648 = vadd.f32 %v1566, %v1644
        %v1649 = vadd.f32 %v1567, %v1645
        %v1650 = vadd.f32 %v1568, %v1646
        %s1651 = sld [smem:[#allocation2 + $0x3b]]
        %v1652 = vstv %s1651
        %v1653 = vmul.f32 %v1627, %v1652
        %v1654 = vmul.f32 %v1628, %v1652
        %v1655 = vmul.f32 %v1629, %v1652
        %v1656 = vmul.f32 %v1630, %v1652
        %v1657 = vadd.f32 %v1575, %v1653
        %v1658 = vadd.f32 %v1576, %v1654
        %v1659 = vadd.f32 %v1577, %v1655
        %v1660 = vadd.f32 %v1578, %v1656
        %s1661 = sld [smem:[#allocation2 + $0x43]]
        %v1662 = vstv %s1661
        %v1663 = vmul.f32 %v1627, %v1662
        %v1664 = vmul.f32 %v1628, %v1662
        %v1665 = vmul.f32 %v1629, %v1662
        %v1666 = vmul.f32 %v1630, %v1662
        %v1667 = vadd.f32 %v1585, %v1663
        %v1668 = vadd.f32 %v1586, %v1664
        %v1669 = vadd.f32 %v1587, %v1665
        %v1670 = vadd.f32 %v1588, %v1666
        %s1671 = sld [smem:[#allocation2 + $0x10]]
        %v1672 = vstv %s1671
        %v1673 = vmul.f32 %v563, %v1672
        %v1674 = vmul.f32 %v565, %v1672
        %v1675 = vmul.f32 %v569, %v1672
        %v1676 = vmul.f32 %v571, %v1672
        %s1677 = sld [smem:[#allocation2 + $0x11]]
        %v1678 = vstv %s1677
        %v1679 = vmul.f32 %v825, %v1678
        %v1680 = vmul.f32 %v827, %v1678
        %v1681 = vmul.f32 %v831, %v1678
        %v1682 = vmul.f32 %v833, %v1678
        %v1683 = vadd.f32 %v1673, %v1679
        %v1684 = vadd.f32 %v1674, %v1680
        %v1685 = vadd.f32 %v1675, %v1681
        %v1686 = vadd.f32 %v1676, %v1682
        %s1687 = sld [smem:[#allocation2 + $0x12]]
        %v1688 = vstv %s1687
        %v1689 = vmul.f32 %v1087, %v1688
        %v1690 = vmul.f32 %v1089, %v1688
        %v1691 = vmul.f32 %v1093, %v1688
        %v1692 = vmul.f32 %v1095, %v1688
        %v1693 = vadd.f32 %v1683, %v1689
        %v1694 = vadd.f32 %v1684, %v1690
        %v1695 = vadd.f32 %v1685, %v1691
        %v1696 = vadd.f32 %v1686, %v1692
        %s1697 = sld [smem:[#allocation2 + $0x13]]
        %v1698 = vstv %s1697
        %v1699 = vmul.f32 %v1349, %v1698
        %v1700 = vmul.f32 %v1351, %v1698
        %v1701 = vmul.f32 %v1355, %v1698
        %v1702 = vmul.f32 %v1357, %v1698
        %v1703 = vadd.f32 %v1693, %v1699
        %v1704 = vadd.f32 %v1694, %v1700
        %v1705 = vadd.f32 %v1695, %v1701
        %v1706 = vadd.f32 %v1696, %v1702
        %s1707 = sld [smem:[#allocation2 + $0x24]]
        %v1708 = vstv %s1707
        %v1709 = vadd.f32 %v1703, %v1708
        %v1710 = vadd.f32 %v1704, %v1708
        %v1711 = vadd.f32 %v1705, %v1708
        %v1712 = vadd.f32 %v1706, %v1708
        %s1713 = sld [smem:[#allocation2 + $0x2c]]
        %v1714 = vstv %s1713
        %v1715 = vmul.f32 %v1709, %v1714
        %v1716 = vmul.f32 %v1710, %v1714
        %v1717 = vmul.f32 %v1711, %v1714
        %v1718 = vmul.f32 %v1712, %v1714
        %v1719 = vadd.f32 %v1637, %v1715
        %v1720 = vadd.f32 %v1638, %v1716
        %v1721 = vadd.f32 %v1639, %v1717
        %v1722 = vadd.f32 %v1640, %v1718
        %s1723 = sld [smem:[#allocation2 + $0x34]]
        %v1724 = vstv %s1723
        %v1725 = vmul.f32 %v1709, %v1724
        %v1726 = vmul.f32 %v1710, %v1724
        %v1727 = vmul.f32 %v1711, %v1724
        %v1728 = vmul.f32 %v1712, %v1724
        %v1729 = vadd.f32 %v1647, %v1725
        %v1730 = vadd.f32 %v1648, %v1726
        %v1731 = vadd.f32 %v1649, %v1727
        %v1732 = vadd.f32 %v1650, %v1728
        %s1733 = sld [smem:[#allocation2 + $0x3c]]
        %v1734 = vstv %s1733
        %v1735 = vmul.f32 %v1709, %v1734
        %v1736 = vmul.f32 %v1710, %v1734
        %v1737 = vmul.f32 %v1711, %v1734
        %v1738 = vmul.f32 %v1712, %v1734
        %v1739 = vadd.f32 %v1657, %v1735
        %v1740 = vadd.f32 %v1658, %v1736
        %v1741 = vadd.f32 %v1659, %v1737
        %v1742 = vadd.f32 %v1660, %v1738
        %s1743 = sld [smem:[#allocation2 + $0x44]]
        %v1744 = vstv %s1743
        %v1745 = vmul.f32 %v1709, %v1744
        %v1746 = vmul.f32 %v1710, %v1744
        %v1747 = vmul.f32 %v1711, %v1744
        %v1748 = vmul.f32 %v1712, %v1744
        %v1749 = vadd.f32 %v1667, %v1745
        %v1750 = vadd.f32 %v1668, %v1746
        %v1751 = vadd.f32 %v1669, %v1747
        %v1752 = vadd.f32 %v1670, %v1748
        %s1753 = sld [smem:[#allocation2 + $0x14]]
        %v1754 = vstv %s1753
        %v1755 = vmul.f32 %v563, %v1754
        %v1756 = vmul.f32 %v565, %v1754
        %v1757 = vmul.f32 %v569, %v1754
        %v1758 = vmul.f32 %v571, %v1754
        %s1759 = sld [smem:[#allocation2 + $0x15]]
        %v1760 = vstv %s1759
        %v1761 = vmul.f32 %v825, %v1760
        %v1762 = vmul.f32 %v827, %v1760
        %v1763 = vmul.f32 %v831, %v1760
        %v1764 = vmul.f32 %v833, %v1760
        %v1765 = vadd.f32 %v1755, %v1761
        %v1766 = vadd.f32 %v1756, %v1762
        %v1767 = vadd.f32 %v1757, %v1763
        %v1768 = vadd.f32 %v1758, %v1764
        %s1769 = sld [smem:[#allocation2 + $0x16]]
        %v1770 = vstv %s1769
        %v1771 = vmul.f32 %v1087, %v1770
        %v1772 = vmul.f32 %v1089, %v1770
        %v1773 = vmul.f32 %v1093, %v1770
        %v1774 = vmul.f32 %v1095, %v1770
        %v1775 = vadd.f32 %v1765, %v1771
        %v1776 = vadd.f32 %v1766, %v1772
        %v1777 = vadd.f32 %v1767, %v1773
        %v1778 = vadd.f32 %v1768, %v1774
        %s1779 = sld [smem:[#allocation2 + $0x17]]
        %v1780 = vstv %s1779
        %v1781 = vmul.f32 %v1349, %v1780
        %v1782 = vmul.f32 %v1351, %v1780
        %v1783 = vmul.f32 %v1355, %v1780
        %v1784 = vmul.f32 %v1357, %v1780
        %v1785 = vadd.f32 %v1775, %v1781
        %v1786 = vadd.f32 %v1776, %v1782
        %v1787 = vadd.f32 %v1777, %v1783
        %v1788 = vadd.f32 %v1778, %v1784
        %s1789 = sld [smem:[#allocation2 + $0x25]]
        %v1790 = vstv %s1789
        %v1791 = vadd.f32 %v1785, %v1790
        %v1792 = vadd.f32 %v1786, %v1790
        %v1793 = vadd.f32 %v1787, %v1790
        %v1794 = vadd.f32 %v1788, %v1790
        %s1795 = sld [smem:[#allocation2 + $0x2d]]
        %v1796 = vstv %s1795
        %v1797 = vmul.f32 %v1791, %v1796
        %v1798 = vmul.f32 %v1792, %v1796
        %v1799 = vmul.f32 %v1793, %v1796
        %v1800 = vmul.f32 %v1794, %v1796
        %v1801 = vadd.f32 %v1719, %v1797
        %v1802 = vadd.f32 %v1720, %v1798
        %v1803 = vadd.f32 %v1721, %v1799
        %v1804 = vadd.f32 %v1722, %v1800
        %s1805 = sld [smem:[#allocation2 + $0x35]]
        %v1806 = vstv %s1805
        %v1807 = vmul.f32 %v1791, %v1806
        %v1808 = vmul.f32 %v1792, %v1806
        %v1809 = vmul.f32 %v1793, %v1806
        %v1810 = vmul.f32 %v1794, %v1806
        %v1811 = vadd.f32 %v1729, %v1807
        %v1812 = vadd.f32 %v1730, %v1808
        %v1813 = vadd.f32 %v1731, %v1809
        %v1814 = vadd.f32 %v1732, %v1810
        %s1815 = sld [smem:[#allocation2 + $0x3d]]
        %v1816 = vstv %s1815
        %v1817 = vmul.f32 %v1791, %v1816
        %v1818 = vmul.f32 %v1792, %v1816
        %v1819 = vmul.f32 %v1793, %v1816
        %v1820 = vmul.f32 %v1794, %v1816
        %v1821 = vadd.f32 %v1739, %v1817
        %v1822 = vadd.f32 %v1740, %v1818
        %v1823 = vadd.f32 %v1741, %v1819
        %v1824 = vadd.f32 %v1742, %v1820
        %s1825 = sld [smem:[#allocation2 + $0x45]]
        %v1826 = vstv %s1825
        %v1827 = vmul.f32 %v1791, %v1826
        %v1828 = vmul.f32 %v1792, %v1826
        %v1829 = vmul.f32 %v1793, %v1826
        %v1830 = vmul.f32 %v1794, %v1826
        %v1831 = vadd.f32 %v1749, %v1827
        %v1832 = vadd.f32 %v1750, %v1828
        %v1833 = vadd.f32 %v1751, %v1829
        %v1834 = vadd.f32 %v1752, %v1830
        %s1835 = sld [smem:[#allocation2 + $0x18]]
        %v1836 = vstv %s1835
        %v1837 = vmul.f32 %v563, %v1836
        %v1838 = vmul.f32 %v565, %v1836
        %v1839 = vmul.f32 %v569, %v1836
        %v1840 = vmul.f32 %v571, %v1836
        %s1841 = sld [smem:[#allocation2 + $0x19]]
        %v1842 = vstv %s1841
        %v1843 = vmul.f32 %v825, %v1842
        %v1844 = vmul.f32 %v827, %v1842
        %v1845 = vmul.f32 %v831, %v1842
        %v1846 = vmul.f32 %v833, %v1842
        %v1847 = vadd.f32 %v1837, %v1843
        %v1848 = vadd.f32 %v1838, %v1844
        %v1849 = vadd.f32 %v1839, %v1845
        %v1850 = vadd.f32 %v1840, %v1846
        %s1851 = sld [smem:[#allocation2 + $0x1a]]
        %v1852 = vstv %s1851
        %v1853 = vmul.f32 %v1087, %v1852
        %v1854 = vmul.f32 %v1089, %v1852
        %v1855 = vmul.f32 %v1093, %v1852
        %v1856 = vmul.f32 %v1095, %v1852
        %v1857 = vadd.f32 %v1847, %v1853
        %v1858 = vadd.f32 %v1848, %v1854
        %v1859 = vadd.f32 %v1849, %v1855
        %v1860 = vadd.f32 %v1850, %v1856
        %s1861 = sld [smem:[#allocation2 + $0x1b]]
        %v1862 = vstv %s1861
        %v1863 = vmul.f32 %v1349, %v1862
        %v1864 = vmul.f32 %v1351, %v1862
        %v1865 = vmul.f32 %v1355, %v1862
        %v1866 = vmul.f32 %v1357, %v1862
        %v1867 = vadd.f32 %v1857, %v1863
        %v1868 = vadd.f32 %v1858, %v1864
        %v1869 = vadd.f32 %v1859, %v1865
        %v1870 = vadd.f32 %v1860, %v1866
        %s1871 = sld [smem:[#allocation2 + $0x26]]
        %v1872 = vstv %s1871
        %v1873 = vadd.f32 %v1867, %v1872
        %v1874 = vadd.f32 %v1868, %v1872
        %v1875 = vadd.f32 %v1869, %v1872
        %v1876 = vadd.f32 %v1870, %v1872
        %s1877 = sld [smem:[#allocation2 + $0x2e]]
        %v1878 = vstv %s1877
        %v1879 = vmul.f32 %v1873, %v1878
        %v1880 = vmul.f32 %v1874, %v1878
        %v1881 = vmul.f32 %v1875, %v1878
        %v1882 = vmul.f32 %v1876, %v1878
        %v1883 = vadd.f32 %v1801, %v1879
        %v1884 = vadd.f32 %v1802, %v1880
        %v1885 = vadd.f32 %v1803, %v1881
        %v1886 = vadd.f32 %v1804, %v1882
        %s1887 = sld [smem:[#allocation2 + $0x36]]
        %v1888 = vstv %s1887
        %v1889 = vmul.f32 %v1873, %v1888
        %v1890 = vmul.f32 %v1874, %v1888
        %v1891 = vmul.f32 %v1875, %v1888
        %v1892 = vmul.f32 %v1876, %v1888
        %v1893 = vadd.f32 %v1811, %v1889
        %v1894 = vadd.f32 %v1812, %v1890
        %v1895 = vadd.f32 %v1813, %v1891
        %v1896 = vadd.f32 %v1814, %v1892
        %s1897 = sld [smem:[#allocation2 + $0x3e]]
        %v1898 = vstv %s1897
        %v1899 = vmul.f32 %v1873, %v1898
        %v1900 = vmul.f32 %v1874, %v1898
        %v1901 = vmul.f32 %v1875, %v1898
        %v1902 = vmul.f32 %v1876, %v1898
        %v1903 = vadd.f32 %v1821, %v1899
        %v1904 = vadd.f32 %v1822, %v1900
        %v1905 = vadd.f32 %v1823, %v1901
        %v1906 = vadd.f32 %v1824, %v1902
        %s1907 = sld [smem:[#allocation2 + $0x46]]
        %v1908 = vstv %s1907
        %v1909 = vmul.f32 %v1873, %v1908
        %v1910 = vmul.f32 %v1874, %v1908
        %v1911 = vmul.f32 %v1875, %v1908
        %v1912 = vmul.f32 %v1876, %v1908
        %v1913 = vadd.f32 %v1831, %v1909
        %v1914 = vadd.f32 %v1832, %v1910
        %v1915 = vadd.f32 %v1833, %v1911
        %v1916 = vadd.f32 %v1834, %v1912
        %s1917 = sld [smem:[#allocation2 + $0x1c]]
        %v1918 = vstv %s1917
        %v1919 = vmul.f32 %v563, %v1918
        %v1920 = vmul.f32 %v565, %v1918
        %v1921 = vmul.f32 %v569, %v1918
        %v1922 = vmul.f32 %v571, %v1918
        %s1923 = sld [smem:[#allocation2 + $0x1d]]
        %v1924 = vstv %s1923
        %v1925 = vmul.f32 %v825, %v1924
        %v1926 = vmul.f32 %v827, %v1924
        %v1927 = vmul.f32 %v831, %v1924
        %v1928 = vmul.f32 %v833, %v1924
        %v1929 = vadd.f32 %v1919, %v1925
        %v1930 = vadd.f32 %v1920, %v1926
        %v1931 = vadd.f32 %v1921, %v1927
        %v1932 = vadd.f32 %v1922, %v1928
        %s1933 = sld [smem:[#allocation2 + $0x1e]]
        %v1934 = vstv %s1933
        %v1935 = vmul.f32 %v1087, %v1934
        %v1936 = vmul.f32 %v1089, %v1934
        %v1937 = vmul.f32 %v1093, %v1934
        %v1938 = vmul.f32 %v1095, %v1934
        %v1939 = vadd.f32 %v1929, %v1935
        %v1940 = vadd.f32 %v1930, %v1936
        %v1941 = vadd.f32 %v1931, %v1937
        %v1942 = vadd.f32 %v1932, %v1938
        %s1943 = sld [smem:[#allocation2 + $0x1f]]
        %v1944 = vstv %s1943
        %v1945 = vmul.f32 %v1349, %v1944
        %v1946 = vmul.f32 %v1351, %v1944
        %v1947 = vmul.f32 %v1355, %v1944
        %v1948 = vmul.f32 %v1357, %v1944
        %v1949 = vadd.f32 %v1939, %v1945
        %v1950 = vadd.f32 %v1940, %v1946
        %v1951 = vadd.f32 %v1941, %v1947
        %v1952 = vadd.f32 %v1942, %v1948
        %s1953 = sld [smem:[#allocation2 + $0x27]]
        %v1954 = vstv %s1953
        %v1955 = vadd.f32 %v1949, %v1954
        %v1956 = vadd.f32 %v1950, %v1954
        %v1957 = vadd.f32 %v1951, %v1954
        %v1958 = vadd.f32 %v1952, %v1954
        %s1959 = sld [smem:[#allocation2 + $0x2f]]
        %v1960 = vstv %s1959
        %v1961 = vmul.f32 %v1955, %v1960
        %v1962 = vmul.f32 %v1956, %v1960
        %v1963 = vmul.f32 %v1957, %v1960
        %v1964 = vmul.f32 %v1958, %v1960
        %v1965 = vadd.f32 %v1883, %v1961
        %v1966 = vadd.f32 %v1884, %v1962
        %v1967 = vadd.f32 %v1885, %v1963
        %v1968 = vadd.f32 %v1886, %v1964
        %s1969 = sld [smem:[#allocation2 + $0x37]]
        %v1970 = vstv %s1969
        %v1971 = vmul.f32 %v1955, %v1970
        %v1972 = vmul.f32 %v1956, %v1970
        %v1973 = vmul.f32 %v1957, %v1970
        %v1974 = vmul.f32 %v1958, %v1970
        %v1975 = vadd.f32 %v1893, %v1971
        %v1976 = vadd.f32 %v1894, %v1972
        %v1977 = vadd.f32 %v1895, %v1973
        %v1978 = vadd.f32 %v1896, %v1974
        %s1979 = sld [smem:[#allocation2 + $0x3f]]
        %v1980 = vstv %s1979
        %v1981 = vmul.f32 %v1955, %v1980
        %v1982 = vmul.f32 %v1956, %v1980
        %v1983 = vmul.f32 %v1957, %v1980
        %v1984 = vmul.f32 %v1958, %v1980
        %v1985 = vadd.f32 %v1903, %v1981
        %v1986 = vadd.f32 %v1904, %v1982
        %v1987 = vadd.f32 %v1905, %v1983
        %v1988 = vadd.f32 %v1906, %v1984
        %s1989 = sld [smem:[#allocation2 + $0x47]]
        %v1990 = vstv %s1989
        %v1991 = vmul.f32 %v1955, %v1990
        %v1992 = vmul.f32 %v1956, %v1990
        %v1993 = vmul.f32 %v1957, %v1990
        %v1994 = vmul.f32 %v1958, %v1990
        %v1995 = vadd.f32 %v1913, %v1991
        %v1996 = vadd.f32 %v1914, %v1992
        %v1997 = vadd.f32 %v1915, %v1993
        %v1998 = vadd.f32 %v1916, %v1994
        %s1999 = sld [smem:[#allocation2 + $0x48]]
        %v2000 = vstv %s1999
        %v2001 = vadd.f32 %v1965, %v2000
        %v2002 = vadd.f32 %v1966, %v2000
        %v2003 = vadd.f32 %v1967, %v2000
        %v2004 = vadd.f32 %v1968, %v2000
        %2005 = vst [vmem:[%s211] sm:$0xff] %v2001
        %2006 = vst [vmem:[%s211 + $0x8] sm:$0xff] %v2002
        %2007 = vst [vmem:[%s211 + $0x10] sm:$0xff] %v2003
        %2008 = vst [vmem:[%s211 + $0x18] sm:$0xff] %v2004
        %s2009 = sld [smem:[#allocation2 + $0x49]]
        %v2010 = vstv %s2009
        %v2011 = vadd.f32 %v1975, %v2010
        %v2012 = vadd.f32 %v1976, %v2010
        %v2013 = vadd.f32 %v1977, %v2010
        %v2014 = vadd.f32 %v1978, %v2010
        %s2015 = scalar_lea.vmem %s211, 32
        %2016 = vst [vmem:[%s2015] sm:$0xff] %v2011
        %2017 = vst [vmem:[%s2015 + $0x8] sm:$0xff] %v2012
        %2018 = vst [vmem:[%s2015 + $0x10] sm:$0xff] %v2013
        %2019 = vst [vmem:[%s2015 + $0x18] sm:$0xff] %v2014
        %s2020 = sld [smem:[#allocation2 + $0x4a]]
        %v2021 = vstv %s2020
        %v2022 = vadd.f32 %v1985, %v2021
        %v2023 = vadd.f32 %v1986, %v2021
        %v2024 = vadd.f32 %v1987, %v2021
        %v2025 = vadd.f32 %v1988, %v2021
        %s2026 = scalar_lea.vmem %s211, 64
        %2027 = vst [vmem:[%s2026] sm:$0xff] %v2022
        %2028 = vst [vmem:[%s2026 + $0x8] sm:$0xff] %v2023
        %2029 = vst [vmem:[%s2026 + $0x10] sm:$0xff] %v2024
        %2030 = vst [vmem:[%s2026 + $0x18] sm:$0xff] %v2025
        %s2031 = sld [smem:[#allocation2 + $0x4b]]
        %v2032 = vstv %s2031
        %v2033 = vadd.f32 %v1995, %v2032
        %v2034 = vadd.f32 %v1996, %v2032
        %v2035 = vadd.f32 %v1997, %v2032
        %v2036 = vadd.f32 %v1998, %v2032
        %s2037 = scalar_lea.vmem %s211, 96
        %2038 = vst [vmem:[%s2037] sm:$0xff] %v2033
        %2039 = vst [vmem:[%s2037 + $0x8] sm:$0xff] %v2034
        %2040 = vst [vmem:[%s2037 + $0x10] sm:$0xff] %v2035
        %2041 = vst [vmem:[%s2037 + $0x18] sm:$0xff] %v2036
        %p2042 = scmp.lt.s32.totalorder %s16, 1
        %s2043 = scalar_select %p2042, %s16, 1
        %s2044 = smul.addr %s2043, 16
        %s2045 = smul.addr %s2044, 8
        %s2046 = scalar_lea.vmem %s4, %s2045
        // Predicated region
        $region41: #{_lambda_.1} parent=35 // pred_check
          %p2047 = pneg %p123
        $region42: #{_lambda_.1} parent=35 // pred_check_branch
          %2049 = sbr.rel (%p2047) target = $region44
        $region43: #{_lambda_.1} parent=35 // pred_region
          _
        $region44: #{_lambda_.1} parent=35 // pred_fallthru
          _
      $region36: #{_lambda_.1} parent=5 // pred_fallthru
        _
      %p2050 = scmp.le.s32.totalorder 2, %s11
      // Predicated region
      $region45: #{_lambda_.1} parent=5 // pred_check
        %p2051 = pneg %p2050
      $region46: #{_lambda_.1} parent=5 // pred_check_branch
        %2053 = sbr.rel (%p2051) target = $region48
      $region47: #{_lambda_.1} parent=5 // pred_region
        %s2054 = ssub.s32 %s11, 2
        // Predicated region
        $region49: #{_lambda_.1} parent=47 // pred_check
          %p2055 = pneg %p129
        $region50: #{_lambda_.1} parent=47 // pred_check_branch
          %2057 = sbr.rel (%p2055) target = $region52
        $region51: #{_lambda_.1} parent=47 // pred_region
          %p2058 = scmp.lt.s32.totalorder %s17, 1
          %s2059 = scalar_select %p2058, %s17, 1
          %s2060 = smul.addr %s2059, 16
          %s2061 = smul.addr %s2060, 8
          %s2062 = scalar_lea.vmem %s4, %s2061
        $region52: #{_lambda_.1} parent=47 // pred_fallthru
          _
      $region48: #{_lambda_.1} parent=5 // pred_fallthru
        _
    $region6: #{_lambda_.1} parent=1 // loop_footer
      %s15 = sadd.s32 1, %s11
    $region7: #{_lambda_.1} parent=1 // loop_footer_branch
      %10 = sbr.rel target = $region3
    $region8: #{_lambda_.1} parent=1 // loop_exit
      _
    %2063 = vsyncpa [#allocation3], 1
    %s2064 = scalar_lea.sflag [#allocation3], 1
    %2065 = vsyncpa %s2064, 1

</llo_original>
